<compile_context>
chip_gen: v6e
topology: v6e:2x2x1
jax: 0.10.0
libtpu: 0.0.40
codegen_flags: <defaults>
</compile_context>

<pallas_src>
import jax
import jax.numpy as jnp
from jax import lax
from jax.experimental import pallas as pl
from jax.experimental.pallas import tpu as pltpu


def _regcn_kernel(feats_ref, dst_ref, nodes_ref, w_self_t_ref, w_agg_t_ref,
                  out_ref, pre_acc, cnt_acc):
    i = pl.program_id(0)                 # node-tile index   ("parallel")
    e = pl.program_id(1)                 # edge-chunk index  ("arbitrary")
    e_last = pl.num_programs(1) - 1

    tn = pre_acc.shape[0]
    ec = dst_ref.shape[1]

    @pl.when(e == 0)
    def _init():
        pre_acc[...] = jnp.zeros_like(pre_acc)
        cnt_acc[...] = jnp.zeros_like(cnt_acc)

    # ---- scatter-add the pre-gathered edge features onto this node tile ----
    # feats_ref holds nodes[src] + rels[rel] for this edge chunk (hoisted
    # gather, computed once in the wrapper -- not replicated per node tile).
    dst = dst_ref[...]                                                # (1, EC)
    row0 = i * tn
    onehot_dst = ((lax.broadcasted_iota(jnp.int32, (tn, ec), 0) + row0) == dst
                  ).astype(jnp.float32)                               # (TN, EC)
    pre_acc[...] += jnp.dot(onehot_dst, feats_ref[...],
                            preferred_element_type=jnp.float32)       # (TN, Din)
    cnt_acc[...] += jnp.sum(onehot_dst, axis=1, keepdims=True)        # (TN, 1)

    # ---- finalize: project, mean, self term, activation --------------------
    @pl.when(e == e_last)
    def _finalize():
        h = jnp.dot(nodes_ref[...], w_self_t_ref[...],
                    preferred_element_type=jnp.float32)               # (TN, Dout)

        cnt = jnp.maximum(cnt_acc[...], 1.0)                          # (TN, 1)
        inv = pl.reciprocal(cnt, approx=True)                         # EUP slot
        inv = inv * (2.0 - cnt * inv)                                 # Newton refine
        mean_pre = pre_acc[...] * inv                                 # (TN, Din)
        agg = jnp.dot(mean_pre, w_agg_t_ref[...],
                      preferred_element_type=jnp.float32)             # (TN, Dout)

        y = h + agg
        slope = (1.0 / 8.0 + 1.0 / 3.0) / 2.0                         # RReLU (eval)
        out_ref[...] = jnp.where(y >= 0, y, slope * y).astype(out_ref.dtype)


def _round_up(x: int, m: int) -> int:
    return (x + m - 1) // m * m


def regcn_layer(nodes_embed, edges_embed, edges, w_self, w_agg,
                *, node_tile=256, edge_chunk=1024,
                vmem_limit_bytes=48 * 1024 * 1024):
    """REGCNLayer.forward.

    nodes_embed : (N, Din)    node features
    edges_embed : (R, Din)    relation features (indexed by edges[:, 1])
    edges       : (E, 3) int  columns (src, rel, dst)
    w_self      : (Dout, Din) fc_self.weight      (bias=False)
    w_agg       : (Dout, Din) fc_aggregate.weight (bias=False)
    returns     : (N, Dout) float32
    """
    nodes_embed = jnp.asarray(nodes_embed, jnp.float32)
    edges_embed = jnp.asarray(edges_embed, jnp.float32)
    w_self_t = jnp.asarray(w_self, jnp.float32).T             # (Din, Dout)
    w_agg_t = jnp.asarray(w_agg, jnp.float32).T               # (Din, Dout)

    n, d_in = nodes_embed.shape
    num_e = edges.shape[0]
    d_out = w_self_t.shape[1]

    edges = jnp.asarray(edges, jnp.int32)

    # Hoisted gather (runs once, outside the kernel, via XLA gather): the
    # per-edge pre-projection features the kernel scatter-means by destination.
    feats = nodes_embed[edges[:, 0]] + edges_embed[edges[:, 1]]        # (E, Din)

    # Node tile: big enough to feed the 256x256 MXU on v6e/v7x, but split so
    # there are >= 2 tiles (both v7x TensorCores get work on the parallel axis).
    n8 = _round_up(n, 8)
    tn = min(node_tile, n8)
    if n8 // tn < 2 and tn > 8:
        tn = _round_up(-(-n8 // 2), 8)
    n_pad = _round_up(n, tn)

    # Edge chunk: multiple of 128 (lane dim of the (1, EC) dst block).  Padded
    # dst = -1 never matches the iota, padded feats rows are zero -> padded
    # edges contribute exactly nothing; padded node rows are sliced off.
    ec = min(edge_chunk, _round_up(num_e, 128))
    e_pad = _round_up(num_e, ec)

    nodes_p = jnp.pad(nodes_embed, ((0, n_pad - n), (0, 0)))
    pad_e = e_pad - num_e
    feats_p = jnp.pad(feats, ((0, pad_e), (0, 0)))
    dst = jnp.pad(edges[:, 2], (0, pad_e), constant_values=-1).reshape(1, e_pad)

    n_tiles = n_pad // tn
    grid = (n_tiles, e_pad // ec)

    flops = (2 * n_pad * e_pad * d_in        # dst scatter matmul (all tiles)
             + 4 * n_pad * d_in * d_out)     # two projections
    bytes_accessed = 4 * (n_tiles * e_pad * d_in     # feats re-read per node tile
                          + n_tiles * e_pad          # dst indices
                          + n_pad * d_in             # node tiles
                          + 2 * d_in * d_out         # weights
                          + n_pad * d_out)           # output

    out = pl.pallas_call(
        _regcn_kernel,
        out_shape=jax.ShapeDtypeStruct((n_pad, d_out), jnp.float32),
        grid_spec=pltpu.PrefetchScalarGridSpec(
            num_scalar_prefetch=0,
            grid=grid,
            in_specs=[
                pl.BlockSpec((ec, d_in),    lambda i, e: (e, 0)),   # gathered edge feats
                pl.BlockSpec((1, ec),       lambda i, e: (0, e)),   # dst indices
                pl.BlockSpec((tn, d_in),    lambda i, e: (i, 0)),   # node tile (self term)
                pl.BlockSpec((d_in, d_out), lambda i, e: (0, 0)),   # W_self^T
                pl.BlockSpec((d_in, d_out), lambda i, e: (0, 0)),   # W_agg^T
            ],
            out_specs=pl.BlockSpec((tn, d_out), lambda i, e: (i, 0)),
            scratch_shapes=[
                pltpu.VMEM((tn, d_in), jnp.float32),   # pre-projection accumulator
                pltpu.VMEM((tn, 1), jnp.float32),      # destination counts
            ],
        ),
        compiler_params=pltpu.CompilerParams(
            dimension_semantics=("parallel", "arbitrary"),
            vmem_limit_bytes=vmem_limit_bytes,
        ),
        cost_estimate=pl.CostEstimate(flops=flops, transcendentals=n_pad,
                                      bytes_accessed=bytes_accessed),
    )(feats_p, dst, nodes_p, w_self_t, w_agg_t)

    return out[:n]


if __name__ == "__main__":
    key = jax.random.PRNGKey(0)
    N, R, E = 250, 16, 600            # num_node, num_relations, num_edge
    D_IN, D_OUT = 128, 128            # lane-dense feature dims

    k1, k2, k3, k4, k5, k6, k7 = jax.random.split(key, 7)
    nodes = jax.random.normal(k1, (N, D_IN), jnp.float32)
    rels = jax.random.normal(k2, (R, D_IN), jnp.float32)

    # Deterministic nn.Linear-style init: U(-1/sqrt(in), 1/sqrt(in)), weight (out, in)
    bound = 1.0 / jnp.sqrt(jnp.float32(D_IN))
    w_self = jax.random.uniform(k3, (D_OUT, D_IN), jnp.float32, -bound, bound)
    w_agg = jax.random.uniform(k4, (D_OUT, D_IN), jnp.float32, -bound, bound)

    src = jax.random.randint(k5, (E,), 0, N)
    rel = jax.random.randint(k6, (E,), 0, R)
    dst = jax.random.randint(k7, (E,), 0, N)
    edges = jnp.stack([src, rel, dst], axis=1).astype(jnp.int32)

    out = regcn_layer(nodes, rels, edges, w_self, w_agg)
    out = jax.block_until_ready(out)

    # ---- pure-JAX reference (exact f32 matmuls) ----------------------------
    hp = jax.lax.Precision.HIGHEST
    h_ref = jnp.dot(nodes, w_self.T, precision=hp)
    msg_ref = jnp.dot(nodes[edges[:, 0]] + rels[edges[:, 1]], w_agg.T, precision=hp)
    agg_ref = jax.ops.segment_sum(msg_ref, edges[:, 2], num_segments=N)
    cnt_ref = jax.ops.segment_sum(jnp.ones((E,), jnp.float32), edges[:, 2],
                                  num_segments=N)
    mean_ref = agg_ref / jnp.maximum(cnt_ref, 1.0)[:, None]
    y_ref = h_ref + mean_ref
    slope = (1.0 / 8.0 + 1.0 / 3.0) / 2.0
    ref = jnp.where(y_ref >= 0, y_ref, slope * y_ref)

    assert out.shape == (N, D_OUT)
    # 1e-3 leaves headroom for MXU pass precision / reduction-order differences.
    assert jnp.allclose(out, ref, atol=1e-3, rtol=1e-3), "mismatch vs reference"
    print("KERNEL_OK")
</pallas_src>

<mosaic_0001>
module attributes {stable_mosaic.version = 11 : i64} {
  func.func @_regcn_kernel(%arg0: i32, %arg1: i32, %arg2: memref<640x128xf32, #tpu.memory_space<vmem>>, %arg3: memref<1x640xi32, #tpu.memory_space<vmem>>, %arg4: memref<128x128xf32, #tpu.memory_space<vmem>>, %arg5: memref<128x128xf32, #tpu.memory_space<vmem>>, %arg6: memref<128x128xf32, #tpu.memory_space<vmem>>, %arg7: memref<128x128xf32, #tpu.memory_space<vmem>>, %arg8: memref<128x128xf32, #tpu.memory_space<vmem>>, %arg9: memref<128x1xf32, #tpu.memory_space<vmem>>) attributes {dimension_semantics = [#tpu.dimension_semantics<parallel>, #tpu.dimension_semantics<arbitrary>], iteration_bounds = array<i64: 2, 1>, scalar_prefetch = 0 : i64, scratch_operands = 2 : i64, tpu.core_type = #tpu.core_type<tc>, window_params = [{transform_indices = @transform_0, window_bounds = array<i64: 640, 128>}, {transform_indices = @transform_1, window_bounds = array<i64: 1, 640>}, {transform_indices = @transform_2, window_bounds = array<i64: 128, 128>}, {pipeline_mode = #tpu.pipeline_mode<synchronous>, transform_indices = @transform_3, window_bounds = array<i64: 128, 128>}, {pipeline_mode = #tpu.pipeline_mode<synchronous>, transform_indices = @transform_4, window_bounds = array<i64: 128, 128>}, {transform_indices = @transform_5, window_bounds = array<i64: 128, 128>}]} {
    %c0_i32 = arith.constant 0 : i32
    %0 = arith.cmpi eq, %arg1, %c0_i32 : i32
    %1 = arith.extui %0 : i1 to i32
    %c0_i32_0 = arith.constant 0 : i32
    %2 = arith.cmpi ne, %1, %c0_i32_0 : i32
    scf.if %2 {
      %cst_15 = arith.constant 0.000000e+00 : f32
      %25 = vector.broadcast %cst_15 : f32 to vector<128x128xf32>
      %c0_16 = arith.constant 0 : index
      %c0_17 = arith.constant 0 : index
      %26 = vector.load %arg8[%c0_16, %c0_17] : memref<128x128xf32, #tpu.memory_space<vmem>>, vector<128x128xf32>
      tpu.vector_store %arg8[%c0_16, %c0_17], %25 {strides = array<i32>} : memref<128x128xf32, #tpu.memory_space<vmem>>, vector<128x128xf32>,
      %cst_18 = arith.constant 0.000000e+00 : f32
      %27 = vector.broadcast %cst_18 : f32 to vector<128x1xf32>
      %c0_19 = arith.constant 0 : index
      %c0_20 = arith.constant 0 : index
      %28 = vector.load %arg9[%c0_19, %c0_20] : memref<128x1xf32, #tpu.memory_space<vmem>>, vector<128x1xf32>
      tpu.vector_store %arg9[%c0_19, %c0_20], %27 {strides = array<i32>} : memref<128x1xf32, #tpu.memory_space<vmem>>, vector<128x1xf32>,
    } else {
    }
    %c0 = arith.constant 0 : index
    %c0_1 = arith.constant 0 : index
    %3 = vector.load %arg3[%c0, %c0_1] : memref<1x640xi32, #tpu.memory_space<vmem>>, vector<1x640xi32>
    %c128_i32 = arith.constant 128 : i32
    %4 = arith.muli %arg0, %c128_i32 : i32
    %5 = tpu.iota {dimensions = array<i32: 0>} : vector<128x640xi32>
    %6 = vector.broadcast %4 : i32 to vector<128x640xi32>
    %7 = arith.addi %5, %6 : vector<128x640xi32>
    %8 = vector.broadcast %3 : vector<1x640xi32> to vector<128x640xi32>
    %9 = arith.cmpi eq, %7, %8 : vector<128x640xi32>
    %10 = arith.extui %9 : vector<128x640xi1> to vector<128x640xi32>
    %11 = arith.sitofp %10 : vector<128x640xi32> to vector<128x640xf32>
    %c0_2 = arith.constant 0 : index
    %c0_3 = arith.constant 0 : index
    %12 = vector.load %arg8[%c0_2, %c0_3] : memref<128x128xf32, #tpu.memory_space<vmem>>, vector<128x128xf32>
    %c0_4 = arith.constant 0 : index
    %c0_5 = arith.constant 0 : index
    %13 = vector.load %arg2[%c0_4, %c0_5] : memref<640x128xf32, #tpu.memory_space<vmem>>, vector<640x128xf32>
    %cst = arith.constant dense<0.000000e+00> : vector<128x128xf32>
    %14 = tpu.matmul %11, %13, %cst {dimension_numbers = #tpu.dot_dimension_numbers<[1], [0], [0], [1], [0, 0, 1, 1], [], []>} : vector<128x640xf32>, vector<640x128xf32>, vector<128x128xf32> -> vector<128x128xf32>
    %15 = arith.addf %12, %14 : vector<128x128xf32>
    %c0_6 = arith.constant 0 : index
    %c0_7 = arith.constant 0 : index
    %16 = vector.load %arg8[%c0_6, %c0_7] : memref<128x128xf32, #tpu.memory_space<vmem>>, vector<128x128xf32>
    tpu.vector_store %arg8[%c0_6, %c0_7], %15 {strides = array<i32>} : memref<128x128xf32, #tpu.memory_space<vmem>>, vector<128x128xf32>,
    %c0_8 = arith.constant 0 : index
    %c0_9 = arith.constant 0 : index
    %17 = vector.load %arg9[%c0_8, %c0_9] : memref<128x1xf32, #tpu.memory_space<vmem>>, vector<128x1xf32>
    %cst_10 = arith.constant dense<0.000000e+00> : vector<128xf32>
    %18 = vector.multi_reduction <add>, %11, %cst_10 [1] : vector<128x640xf32> to vector<128xf32>
    %19 = vector.shape_cast %18 : vector<128xf32> to vector<128x1xf32>
    %20 = arith.addf %17, %19 : vector<128x1xf32>
    %c0_11 = arith.constant 0 : index
    %c0_12 = arith.constant 0 : index
    %21 = vector.load %arg9[%c0_11, %c0_12] : memref<128x1xf32, #tpu.memory_space<vmem>>, vector<128x1xf32>
    tpu.vector_store %arg9[%c0_11, %c0_12], %20 {strides = array<i32>} : memref<128x1xf32, #tpu.memory_space<vmem>>, vector<128x1xf32>,
    %c0_i32_13 = arith.constant 0 : i32
    %22 = arith.cmpi eq, %arg1, %c0_i32_13 : i32
    %23 = arith.extui %22 : i1 to i32
    %c0_i32_14 = arith.constant 0 : i32
    %24 = arith.cmpi ne, %23, %c0_i32_14 : i32
    scf.if %24 {
      %c0_15 = arith.constant 0 : index
      %c0_16 = arith.constant 0 : index
      %25 = vector.load %arg4[%c0_15, %c0_16] : memref<128x128xf32, #tpu.memory_space<vmem>>, vector<128x128xf32>
      %c0_17 = arith.constant 0 : index
      %c0_18 = arith.constant 0 : index
      %26 = vector.load %arg5[%c0_17, %c0_18] : memref<128x128xf32, #tpu.memory_space<vmem>>, vector<128x128xf32>
      %cst_19 = arith.constant dense<0.000000e+00> : vector<128x128xf32>
      %27 = tpu.matmul %25, %26, %cst_19 {dimension_numbers = #tpu.dot_dimension_numbers<[1], [0], [0], [1], [0, 0, 1, 1], [], []>} : vector<128x128xf32>, vector<128x128xf32>, vector<128x128xf32> -> vector<128x128xf32>
      %c0_20 = arith.constant 0 : index
      %c0_21 = arith.constant 0 : index
      %28 = vector.load %arg9[%c0_20, %c0_21] : memref<128x1xf32, #tpu.memory_space<vmem>>, vector<128x1xf32>
      %cst_22 = arith.constant 1.000000e+00 : f32
      %29 = vector.broadcast %cst_22 : f32 to vector<128x1xf32>
      %30 = arith.maximumf %28, %29 : vector<128x1xf32>
      %31 = tpu.reciprocal %30 {approx = true} : vector<128x1xf32> -> vector<128x1xf32>
      %32 = arith.mulf %30, %31 : vector<128x1xf32>
      %cst_23 = arith.constant 2.000000e+00 : f32
      %33 = vector.broadcast %cst_23 : f32 to vector<128x1xf32>
      %34 = arith.subf %33, %32 : vector<128x1xf32>
      %35 = arith.mulf %31, %34 : vector<128x1xf32>
      %c0_24 = arith.constant 0 : index
      %c0_25 = arith.constant 0 : index
      %36 = vector.load %arg8[%c0_24, %c0_25] : memref<128x128xf32, #tpu.memory_space<vmem>>, vector<128x128xf32>
      %37 = vector.broadcast %35 : vector<128x1xf32> to vector<128x128xf32>
      %38 = arith.mulf %36, %37 : vector<128x128xf32>
      %c0_26 = arith.constant 0 : index
      %c0_27 = arith.constant 0 : index
      %39 = vector.load %arg6[%c0_26, %c0_27] : memref<128x128xf32, #tpu.memory_space<vmem>>, vector<128x128xf32>
      %cst_28 = arith.constant dense<0.000000e+00> : vector<128x128xf32>
      %40 = tpu.matmul %38, %39, %cst_28 {dimension_numbers = #tpu.dot_dimension_numbers<[1], [0], [0], [1], [0, 0, 1, 1], [], []>} : vector<128x128xf32>, vector<128x128xf32>, vector<128x128xf32> -> vector<128x128xf32>
      %41 = arith.addf %27, %40 : vector<128x128xf32>
      %cst_29 = arith.constant 0.000000e+00 : f32
      %42 = vector.broadcast %cst_29 : f32 to vector<128x128xf32>
      %43 = arith.cmpf oge, %41, %42 : vector<128x128xf32>
      %cst_30 = arith.constant 0.229166672 : f32
      %44 = vector.broadcast %cst_30 : f32 to vector<128x128xf32>
      %45 = arith.mulf %44, %41 : vector<128x128xf32>
      %46 = arith.select %43, %41, %45 : vector<128x128xi1>, vector<128x128xf32>
      %c0_31 = arith.constant 0 : index
      %c0_32 = arith.constant 0 : index
      %47 = vector.load %arg7[%c0_31, %c0_32] : memref<128x128xf32, #tpu.memory_space<vmem>>, vector<128x128xf32>
      tpu.vector_store %arg7[%c0_31, %c0_32], %46 {strides = array<i32>} : memref<128x128xf32, #tpu.memory_space<vmem>>, vector<128x128xf32>,
    } else {
    }
    return
  }
  func.func @transform_0(%arg0: i32, %arg1: i32) -> (i32, i32) {
    %c0_i32 = arith.constant 0 : i32
    %c0_i32_0 = arith.constant 0 : i32
    return %arg1, %c0_i32 : i32, i32
  }
  func.func @transform_1(%arg0: i32, %arg1: i32) -> (i32, i32) {
    %c0_i32 = arith.constant 0 : i32
    %c0_i32_0 = arith.constant 0 : i32
    return %c0_i32, %arg1 : i32, i32
  }
  func.func @transform_2(%arg0: i32, %arg1: i32) -> (i32, i32) {
    %c0_i32 = arith.constant 0 : i32
    %c0_i32_0 = arith.constant 0 : i32
    return %arg0, %c0_i32 : i32, i32
  }
  func.func @transform_3(%arg0: i32, %arg1: i32) -> (i32, i32) {
    %c0_i32 = arith.constant 0 : i32
    %c0_i32_0 = arith.constant 0 : i32
    %c0_i32_1 = arith.constant 0 : i32
    return %c0_i32, %c0_i32_0 : i32, i32
  }
  func.func @transform_4(%arg0: i32, %arg1: i32) -> (i32, i32) {
    %c0_i32 = arith.constant 0 : i32
    %c0_i32_0 = arith.constant 0 : i32
    %c0_i32_1 = arith.constant 0 : i32
    return %c0_i32, %c0_i32_0 : i32, i32
  }
  func.func @transform_5(%arg0: i32, %arg1: i32) -> (i32, i32) {
    %c0_i32 = arith.constant 0 : i32
    %c0_i32_0 = arith.constant 0 : i32
    return %arg0, %c0_i32 : i32, i32
  }
}

</mosaic_0001>

<llo_original>
// kernel: tpu_custom_call.1
$region0: #{tpu_custom_call.1}
  #allocation0 [shape = 'u32[]', space=smem, size = 0x4, offset = 0x4, fixed_abs, tag = 'smem constant byte address 0x4 - core index']
  #allocation1 [shape = 'u32[144,128]{1,0:T(1,128)}', space=vmem, size = 0x12000, scoped, tag = 'internal scratch']
  #allocation2 [shape = 'f32[128,128]{1,0:T(8,128)}', space=vmem, size = 0x10000, scoped, tag = 'scratch operand']
  #allocation3 [shape = 'f32[128,1]{1,0:T(8,128)}', space=vmem, size = 0x10000, scoped, tag = 'scratch operand']
  %s0 = inlined_call_operand.hbm [shape: f32[640,128], index: 0, kind: input, shape index: {}]
  %s1 = inlined_call_operand.hbm [shape: s32[1,640], index: 1, kind: input, shape index: {}]
  %s2 = inlined_call_operand.hbm [shape: f32[256,128], index: 2, kind: input, shape index: {}]
  %s3 = inlined_call_operand.hbm [shape: f32[128,128], index: 3, kind: input, shape index: {}]
  %s4 = inlined_call_operand.hbm [shape: f32[128,128], index: 4, kind: input, shape index: {}]
  %s5 = inlined_call_operand.hbm [shape: f32[256,128], index: 5, kind: output, shape index: {}]
  %s6 = sld [smem:[#allocation0]]
  $region81: #{tpu_custom_call.1} parent=0
    _
  %s8 = ssub.s32 1, %s6
  %s9 = scalar_select 0, %s8, %s6
  $region1: #{tpu_custom_call.1} parent=0
    #allocation4 [shape = 'u8[327680]{0}', space=vmem, size = 0x50000, scoped, tag = 'input window, operand 0, single buffered']
    #allocation5 [shape = 's32[2]{0}', space=sflag, size = 0x8, scoped, tag = 'scoped memory for tpu_custom_call.1']
    #allocation6 [shape = 's32[2]{0}', space=sflag, size = 0x8, scoped, tag = 'scoped memory for tpu_custom_call.1']
    #allocation7 [shape = 'u8[2560]{0}', space=vmem, size = 0xc00, scoped, tag = 'input window, operand 1, single buffered']
    #allocation8 [shape = 's32[1]{0}', space=sflag, size = 0x4, scoped, tag = 'scoped memory for tpu_custom_call.1']
    #allocation9 [shape = 'u8[131072]{0}', space=vmem, size = 0x20000, scoped, tag = 'input window, operand 2']
    #allocation10 [shape = 'u8[65536]{0}', space=vmem, size = 0x10000, scoped, tag = 'input window, operand 3, single buffered']
    #allocation11 [shape = 'u8[65536]{0}', space=vmem, size = 0x10000, scoped, tag = 'input window, operand 4, single buffered']
    #allocation12 [shape = 's32[1]{0}', space=sflag, size = 0x4, scoped, tag = 'scoped memory for tpu_custom_call.1']
    #allocation13 [shape = 'u8[131072]{0}', space=vmem, size = 0x20000, scoped, tag = 'output window, operand 0']
    %10 = vsyncpa [#allocation5], 0
    %11 = vsyncpa [#allocation8], 0
    %12 = vsyncpa [#allocation12], 0
    %13 = vsyncpa [#allocation6], 0
    %s14 = scalar_lea.sflag [#allocation6], 1
    %15 = vsyncpa %s14, 0
    loop: start=0, step=1, limit=4
    $region2: #{tpu_custom_call.1} parent=1 // loop_pre_header
      _
    $region3: #{tpu_custom_call.1} parent=1 // loop_header
      %s17 = sphi 0, %s21
      %p18 = scmp.ge.s32.totalorder %s17, 4
      %s24 = sphi 0, %s36
      %s25 = sphi 0, %s32
      %s26 = sphi 0, %s24
      %s27 = sphi 0, %s25
      %s28 = sphi 0, %s26
      %s29 = sphi 0, %s27
      %s39 = sphi 0, %s41
      %s42 = sphi 0, %s39
      %s43 = sphi 0, %s42
      %s59 = sphi 0, %s43
      %s65 = sphi 0, %s67
      %s68 = sphi 0, %s65
      %s69 = sphi 0, %s68
      %s85 = sphi 0, %s69
      %s91 = sphi 0, %s93
      %s94 = sphi 0, %s91
      %s95 = sphi 0, %s94
      %s111 = sphi 0, %s95
      %s115 = sphi 0, %s115
      %s117 = sphi 0, %s115
      %s118 = sphi 0, %s117
      %s132 = sphi 0, %s118
      %s136 = sphi 0, %s136
      %s138 = sphi 0, %s136
      %s139 = sphi 0, %s138
      %s153 = sphi 0, %s139
      %s159 = sphi 0, %s161
      %s162 = sphi 0, %s159
      %s163 = sphi 0, %s162
      %s179 = sphi 0, %s163
    $region4: #{tpu_custom_call.1} parent=1 // loop_header_branch
      %20 = sbr.rel (%p18) target = $region8
    $region5: #{tpu_custom_call.1} parent=1 // loop_body
      %s22 = ssub.s32 %s17, 1
      %s23 = ssub.s32 %s17, 2
      %s30 = sadd.s32 1, %s25
      %p31 = scmp.ge.s32.totalorder %s30, 1
      %s32 = scalar_select %p31, 0, %s30
      %s33 = sadd.s32 1, %s24
      %s34 = scalar_select %p31, %s33, %s24
      %p35 = scmp.ge.s32.totalorder %s34, 2
      %s36 = scalar_select %p35, 0, %s34
      %s37 = ssub.s32 %s25, %s32
      %p38 = scmp.eq.s32.totalorder %s37, 0
      %s40 = sadd.s32 %s39, 1
      %s41 = scalar_select %p38, %s39, %s40
      %p44 = pneg %p38
      %p45 = scmp.eq.s32.totalorder %s17, 1
      %p46 = por %p44, %p45
      %p47 = scmp.ne.s32.totalorder %s39, %s42
      %p48 = scmp.eq.s32.totalorder %s17, 0
      %p49 = por %p47, %p48
      %p50 = scmp.ne.s32.totalorder %s39, %s42
      %p51 = scmp.eq.s32.totalorder %s22, 1
      %p52 = por %p50, %p51
      %p53 = scmp.ne.s32.totalorder %s42, %s43
      %p54 = scmp.eq.s32.totalorder %s22, 0
      %p55 = por %p53, %p54
      %p56 = scmp.ne.s32.totalorder %s42, %s43
      %p57 = scmp.eq.s32.totalorder %s23, 1
      %p58 = por %p56, %p57
      %p60 = scmp.ne.s32.totalorder %s43, %s59
      %p61 = scmp.eq.s32.totalorder %s23, 0
      %p62 = por %p60, %p61
      %s63 = ssub.s32 %s25, %s32
      %p64 = scmp.eq.s32.totalorder %s63, 0
      %s66 = sadd.s32 %s65, 1
      %s67 = scalar_select %p64, %s65, %s66
      %p70 = pneg %p64
      %p71 = scmp.eq.s32.totalorder %s17, 1
      %p72 = por %p70, %p71
      %p73 = scmp.ne.s32.totalorder %s65, %s68
      %p74 = scmp.eq.s32.totalorder %s17, 0
      %p75 = por %p73, %p74
      %p76 = scmp.ne.s32.totalorder %s65, %s68
      %p77 = scmp.eq.s32.totalorder %s22, 1
      %p78 = por %p76, %p77
      %p79 = scmp.ne.s32.totalorder %s68, %s69
      %p80 = scmp.eq.s32.totalorder %s22, 0
      %p81 = por %p79, %p80
      %p82 = scmp.ne.s32.totalorder %s68, %s69
      %p83 = scmp.eq.s32.totalorder %s23, 1
      %p84 = por %p82, %p83
      %p86 = scmp.ne.s32.totalorder %s69, %s85
      %p87 = scmp.eq.s32.totalorder %s23, 0
      %p88 = por %p86, %p87
      %s89 = ssub.s32 %s24, %s36
      %p90 = scmp.eq.s32.totalorder %s89, 0
      %s92 = sadd.s32 %s91, 1
      %s93 = scalar_select %p90, %s91, %s92
      %p96 = pneg %p90
      %p97 = scmp.eq.s32.totalorder %s17, 1
      %p98 = por %p96, %p97
      %p99 = scmp.ne.s32.totalorder %s91, %s94
      %p100 = scmp.eq.s32.totalorder %s17, 0
      %p101 = por %p99, %p100
      %p102 = scmp.ne.s32.totalorder %s91, %s94
      %p103 = scmp.eq.s32.totalorder %s22, 1
      %p104 = por %p102, %p103
      %p105 = scmp.ne.s32.totalorder %s94, %s95
      %p106 = scmp.eq.s32.totalorder %s22, 0
      %p107 = por %p105, %p106
      %p108 = scmp.ne.s32.totalorder %s94, %s95
      %p109 = scmp.eq.s32.totalorder %s23, 1
      %p110 = por %p108, %p109
      %p112 = scmp.ne.s32.totalorder %s95, %s111
      %p113 = scmp.eq.s32.totalorder %s23, 0
      %p114 = por %p112, %p113
      %s116 = sadd.s32 %s115, 1
      %p119 = scmp.eq.s32.totalorder %s17, 1
      %p120 = scmp.ne.s32.totalorder %s115, %s117
      %p121 = scmp.eq.s32.totalorder %s17, 0
      %p122 = por %p120, %p121
      %p123 = scmp.ne.s32.totalorder %s115, %s117
      %p124 = scmp.eq.s32.totalorder %s22, 1
      %p125 = por %p123, %p124
      %p126 = scmp.ne.s32.totalorder %s117, %s118
      %p127 = scmp.eq.s32.totalorder %s22, 0
      %p128 = por %p126, %p127
      %p129 = scmp.ne.s32.totalorder %s117, %s118
      %p130 = scmp.eq.s32.totalorder %s23, 1
      %p131 = por %p129, %p130
      %p133 = scmp.ne.s32.totalorder %s118, %s132
      %p134 = scmp.eq.s32.totalorder %s23, 0
      %p135 = por %p133, %p134
      %s137 = sadd.s32 %s136, 1
      %p140 = scmp.eq.s32.totalorder %s17, 1
      %p141 = scmp.ne.s32.totalorder %s136, %s138
      %p142 = scmp.eq.s32.totalorder %s17, 0
      %p143 = por %p141, %p142
      %p144 = scmp.ne.s32.totalorder %s136, %s138
      %p145 = scmp.eq.s32.totalorder %s22, 1
      %p146 = por %p144, %p145
      %p147 = scmp.ne.s32.totalorder %s138, %s139
      %p148 = scmp.eq.s32.totalorder %s22, 0
      %p149 = por %p147, %p148
      %p150 = scmp.ne.s32.totalorder %s138, %s139
      %p151 = scmp.eq.s32.totalorder %s23, 1
      %p152 = por %p150, %p151
      %p154 = scmp.ne.s32.totalorder %s139, %s153
      %p155 = scmp.eq.s32.totalorder %s23, 0
      %p156 = por %p154, %p155
      %s157 = ssub.s32 %s24, %s36
      %p158 = scmp.eq.s32.totalorder %s157, 0
      %s160 = sadd.s32 %s159, 1
      %s161 = scalar_select %p158, %s159, %s160
      %p164 = pneg %p158
      %p165 = scmp.eq.s32.totalorder %s17, 1
      %p166 = por %p164, %p165
      %p167 = scmp.ne.s32.totalorder %s159, %s162
      %p168 = scmp.eq.s32.totalorder %s17, 0
      %p169 = por %p167, %p168
      %p170 = scmp.ne.s32.totalorder %s159, %s162
      %p171 = scmp.eq.s32.totalorder %s22, 1
      %p172 = por %p170, %p171
      %p173 = scmp.ne.s32.totalorder %s162, %s163
      %p174 = scmp.eq.s32.totalorder %s22, 0
      %p175 = por %p173, %p174
      %p176 = scmp.ne.s32.totalorder %s162, %s163
      %p177 = scmp.eq.s32.totalorder %s23, 1
      %p178 = por %p176, %p177
      %p180 = scmp.ne.s32.totalorder %s163, %s179
      %p181 = scmp.eq.s32.totalorder %s23, 0
      %p182 = por %p180, %p181
      %p183 = scmp.le.s32.totalorder 1, %s17
      %p184 = scmp.lt.s32.totalorder %s17, 3
      %p185 = pnand %p183, %p184
      %p186 = pneg %p185
      // Predicated region
      $region9: #{tpu_custom_call.1} parent=5 // pred_check
        _
      $region10: #{tpu_custom_call.1} parent=5 // pred_check_branch
        %188 = sbr.rel (%p185) target = $region12
      $region11: #{tpu_custom_call.1} parent=5 // pred_region
        %s189 = ssub.s32 %s17, 1
        // Predicated region
        $region13: #{tpu_custom_call.1} parent=11 // pred_check
          %p190 = pneg %p55
        $region14: #{tpu_custom_call.1} parent=11 // pred_check_branch
          %192 = sbr.rel (%p190) target = $region16
        $region15: #{tpu_custom_call.1} parent=11 // pred_region
          %s193 = smul.u32 80, %s27
          %s195 = ssub.s32 10240, 10240
          %196 = vsyncadd [#allocation5], %s195
          %s197 = smul.addr %s193, 128
          %s198 = scalar_lea.hbm %s0, %s197
          %s199 = sshll.u32 [#allocation4], 4
          %s200 = int_to_ptr.vmem [resolvable:$true] %s199
          %205 = dma.hbm_to_vmem [thread:$0]  %s198, 10240, %s200, [#allocation5], 128, 128, 8
        $region16: #{tpu_custom_call.1} parent=11 // pred_fallthru
          _
        // Predicated region
        $region17: #{tpu_custom_call.1} parent=11 // pred_check
          %p206 = pneg %p81
        $region18: #{tpu_custom_call.1} parent=11 // pred_check_branch
          %208 = sbr.rel (%p206) target = $region20
        $region19: #{tpu_custom_call.1} parent=11 // pred_region
          %s209 = smul.u32 5, %s27
          %s211 = ssub.s32 80, 80
          %212 = vsyncadd [#allocation8], %s211
          %s213 = smul.addr %s209, 16
          %s214 = scalar_lea.hbm %s1, %s213
          %s216 = sshll.u32 [#allocation7], 4
          %s217 = int_to_ptr.vmem [resolvable:$true] %s216
          %219 = dma.hbm_to_vmem [thread:$0]  %s214, 80, %s217, [#allocation8]
        $region20: #{tpu_custom_call.1} parent=11 // pred_fallthru
          _
        // Predicated region
        $region21: #{tpu_custom_call.1} parent=11 // pred_check
          %p220 = pneg %p128
        $region22: #{tpu_custom_call.1} parent=11 // pred_check_branch
          %222 = sbr.rel (%p220) target = $region24
        $region23: #{tpu_custom_call.1} parent=11 // pred_region
          %s224 = ssub.s32 2048, 2048
          %225 = vsyncadd [#allocation8], %s224
          %s226 = sshll.u32 [#allocation10], 4
          %s227 = int_to_ptr.vmem [resolvable:$true] %s226
          %232 = dma.hbm_to_vmem [thread:$0]  %s3, 2048, %s227, [#allocation8], 128, 128, 8
        $region24: #{tpu_custom_call.1} parent=11 // pred_fallthru
          _
        // Predicated region
        $region25: #{tpu_custom_call.1} parent=11 // pred_check
          %p233 = pneg %p149
        $region26: #{tpu_custom_call.1} parent=11 // pred_check_branch
          %235 = sbr.rel (%p233) target = $region28
        $region27: #{tpu_custom_call.1} parent=11 // pred_region
          %s237 = ssub.s32 2048, 2048
          %238 = vsyncadd [#allocation12], %s237
          %s239 = sshll.u32 [#allocation11], 4
          %s240 = int_to_ptr.vmem [resolvable:$true] %s239
          %245 = dma.hbm_to_vmem [thread:$0]  %s4, 2048, %s240, [#allocation12], 128, 128, 8
        $region28: #{tpu_custom_call.1} parent=11 // pred_fallthru
          _
      $region12: #{tpu_custom_call.1} parent=5 // pred_fallthru
        _
      %p246 = scmp.lt.s32.totalorder %s17, 2
      // Predicated region
      $region29: #{tpu_custom_call.1} parent=5 // pred_check
        %p247 = pneg %p246
      $region30: #{tpu_custom_call.1} parent=5 // pred_check_branch
        %249 = sbr.rel (%p247) target = $region32
      $region31: #{tpu_custom_call.1} parent=5 // pred_region
        // Predicated region
        $region33: #{tpu_custom_call.1} parent=31 // pred_check
          %p250 = pneg %p101
        $region34: #{tpu_custom_call.1} parent=31 // pred_check_branch
          %252 = sbr.rel (%p250) target = $region36
        $region35: #{tpu_custom_call.1} parent=31 // pred_region
          %s253 = sand.u32 %s17, 1
          %s254 = scalar_lea.sflag [#allocation5], %s253
          %s255 = sand.u32 %s91, 1
          %s256 = smul.addr %s255, 128
          %s257 = scalar_lea.vmem [#allocation9], %s256
          %s258 = smul.u32 16, %s24
          %s260 = ssub.s32 2048, 2048
          %261 = vsyncadd %s254, %s260
          %s262 = smul.addr %s258, 128
          %s263 = scalar_lea.hbm %s2, %s262
          %s264 = sshll.u32 %s257, 4
          %s265 = int_to_ptr.vmem [resolvable:$true] %s264
          %270 = dma.hbm_to_vmem [thread:$0]  %s263, 2048, %s265, %s254, 128, 128, 8
        $region36: #{tpu_custom_call.1} parent=31 // pred_fallthru
          _
      $region32: #{tpu_custom_call.1} parent=5 // pred_fallthru
        _
      %p271 = scmp.le.s32.totalorder 1, %s17
      %p272 = scmp.lt.s32.totalorder %s17, 3
      %p273 = pnand %p271, %p272
      %p274 = pneg %p273
      // Predicated region
      $region37: #{tpu_custom_call.1} parent=5 // pred_check
        _
      $region38: #{tpu_custom_call.1} parent=5 // pred_check_branch
        %276 = sbr.rel (%p273) target = $region40
      $region39: #{tpu_custom_call.1} parent=5 // pred_region
        %s277 = ssub.s32 %s17, 1
        // Predicated region
        $region41: #{tpu_custom_call.1} parent=39 // pred_check
          %p278 = pneg %p55
        $region42: #{tpu_custom_call.1} parent=39 // pred_check_branch
          %280 = sbr.rel (%p278) target = $region44
        $region43: #{tpu_custom_call.1} parent=39 // pred_region
          %281 = dma.done [#allocation5], 10240
        $region44: #{tpu_custom_call.1} parent=39 // pred_fallthru
          _
        // Predicated region
        $region45: #{tpu_custom_call.1} parent=39 // pred_check
          %p282 = pneg %p81
        $region46: #{tpu_custom_call.1} parent=39 // pred_check_branch
          %284 = sbr.rel (%p282) target = $region48
        $region47: #{tpu_custom_call.1} parent=39 // pred_region
          %285 = dma.done [#allocation8], 80
        $region48: #{tpu_custom_call.1} parent=39 // pred_fallthru
          _
        %s286 = sand.u32 %s22, 1
        %s287 = scalar_lea.sflag [#allocation5], %s286
        %s288 = sand.u32 %s94, 1
        %s289 = smul.addr %s288, 128
        %s290 = scalar_lea.vmem [#allocation9], %s289
        // Predicated region
        $region49: #{tpu_custom_call.1} parent=39 // pred_check
          %p291 = pneg %p107
        $region50: #{tpu_custom_call.1} parent=39 // pred_check_branch
          %293 = sbr.rel (%p291) target = $region52
        $region51: #{tpu_custom_call.1} parent=39 // pred_region
          %294 = dma.done %s287, 2048
        $region52: #{tpu_custom_call.1} parent=39 // pred_fallthru
          _
        // Predicated region
        $region53: #{tpu_custom_call.1} parent=39 // pred_check
          %p295 = pneg %p128
        $region54: #{tpu_custom_call.1} parent=39 // pred_check_branch
          %297 = sbr.rel (%p295) target = $region56
        $region55: #{tpu_custom_call.1} parent=39 // pred_region
          %298 = dma.done [#allocation8], 2048
        $region56: #{tpu_custom_call.1} parent=39 // pred_fallthru
          _
        // Predicated region
        $region57: #{tpu_custom_call.1} parent=39 // pred_check
          %p299 = pneg %p149
        $region58: #{tpu_custom_call.1} parent=39 // pred_check_branch
          %301 = sbr.rel (%p299) target = $region60
        $region59: #{tpu_custom_call.1} parent=39 // pred_region
          %302 = dma.done [#allocation12], 2048
        $region60: #{tpu_custom_call.1} parent=39 // pred_fallthru
          _
        %p303 = pneg %p55
        %p304 = pneg %p52
        %p305 = pneg %p81
        %p306 = pneg %p78
        %s307 = sand.u32 %s22, 1
        %s308 = scalar_lea.sflag [#allocation5], %s307
        %s309 = sand.u32 %s94, 1
        %s310 = smul.addr %s309, 128
        %s311 = scalar_lea.vmem [#allocation9], %s310
        %p312 = pneg %p107
        %p313 = pneg %p104
        %p314 = pneg %p128
        %p315 = pneg %p125
        %p316 = pneg %p149
        %p317 = pneg %p146
        %p318 = pneg %p175
        %p319 = pneg %p172
        %s320 = sand.u32 %s162, 1
        %s321 = scalar_lea.sflag [#allocation6], %s320
        %s322 = sand.u32 %s162, 1
        %s323 = smul.addr %s322, 128
        %s324 = scalar_lea.vmem [#allocation13], %s323
        %s325 = smul.u32 80, %s27
        %s326 = smul.u32 5, %s27
        %s327 = smul.u32 16, %s26
        %s328 = smul.u32 16, %s26
        %p329 = scmp.eq.s32.totalorder %s27, 0
        // Predicated region
        $region61: #{tpu_custom_call.1} parent=39 // pred_check
          %p330 = pneg %p329
        $region62: #{tpu_custom_call.1} parent=39 // pred_check_branch
          %332 = sbr.rel (%p330) target = $region64
        $region63: #{tpu_custom_call.1} parent=39 // pred_region
          %333 = vst [vmem:[#allocation2] sm:$0xff] 0.0
          %334 = vst [vmem:[#allocation2 + $0x8] sm:$0xff] 0.0
          %335 = vst [vmem:[#allocation2 + $0x10] sm:$0xff] 0.0
          %336 = vst [vmem:[#allocation2 + $0x18] sm:$0xff] 0.0
          %337 = vst [vmem:[#allocation2 + $0x20] sm:$0xff] 0.0
          %338 = vst [vmem:[#allocation2 + $0x28] sm:$0xff] 0.0
          %339 = vst [vmem:[#allocation2 + $0x30] sm:$0xff] 0.0
          %340 = vst [vmem:[#allocation2 + $0x38] sm:$0xff] 0.0
          %341 = vst [vmem:[#allocation2 + $0x40] sm:$0xff] 0.0
          %342 = vst [vmem:[#allocation2 + $0x48] sm:$0xff] 0.0
          %343 = vst [vmem:[#allocation2 + $0x50] sm:$0xff] 0.0
          %344 = vst [vmem:[#allocation2 + $0x58] sm:$0xff] 0.0
          %345 = vst [vmem:[#allocation2 + $0x60] sm:$0xff] 0.0
          %346 = vst [vmem:[#allocation2 + $0x68] sm:$0xff] 0.0
          %347 = vst [vmem:[#allocation2 + $0x70] sm:$0xff] 0.0
          %348 = vst [vmem:[#allocation2 + $0x78] sm:$0xff] 0.0
          %vm349 = vcmask 7168
          %350 = vst.msk [vmem:[#allocation3] sm:$0xff] %vm349, 0.0
          %351 = vst.msk [vmem:[#allocation3 + $0x8] sm:$0xff] %vm349, 0.0
          %352 = vst.msk [vmem:[#allocation3 + $0x10] sm:$0xff] %vm349, 0.0
          %353 = vst.msk [vmem:[#allocation3 + $0x18] sm:$0xff] %vm349, 0.0
          %354 = vst.msk [vmem:[#allocation3 + $0x20] sm:$0xff] %vm349, 0.0
          %355 = vst.msk [vmem:[#allocation3 + $0x28] sm:$0xff] %vm349, 0.0
          %356 = vst.msk [vmem:[#allocation3 + $0x30] sm:$0xff] %vm349, 0.0
          %357 = vst.msk [vmem:[#allocation3 + $0x38] sm:$0xff] %vm349, 0.0
          %358 = vst.msk [vmem:[#allocation3 + $0x40] sm:$0xff] %vm349, 0.0
          %359 = vst.msk [vmem:[#allocation3 + $0x48] sm:$0xff] %vm349, 0.0
          %360 = vst.msk [vmem:[#allocation3 + $0x50] sm:$0xff] %vm349, 0.0
          %361 = vst.msk [vmem:[#allocation3 + $0x58] sm:$0xff] %vm349, 0.0
          %362 = vst.msk [vmem:[#allocation3 + $0x60] sm:$0xff] %vm349, 0.0
          %363 = vst.msk [vmem:[#allocation3 + $0x68] sm:$0xff] %vm349, 0.0
          %364 = vst.msk [vmem:[#allocation3 + $0x70] sm:$0xff] %vm349, 0.0
          %365 = vst.msk [vmem:[#allocation3 + $0x78] sm:$0xff] %vm349, 0.0
        $region64: #{tpu_custom_call.1} parent=39 // pred_fallthru
          _
        %v366 = vld [vmem:[#allocation7] sm:$0x1f]
        %s367 = smul.u32 %s26, 128
        %v368 = vlaneseq
        %v369 = vshrl.u32 %v368, 7
        %v370 = vadd.s32 %v369, 8
        %v371 = vadd.s32 %v369, 16
        %v372 = vadd.s32 %v369, 24
        %v373 = vadd.s32 %v369, 32
        %v374 = vadd.s32 %v369, 40
        %v375 = vadd.s32 %v369, 48
        %v376 = vadd.s32 %v369, 56
        %v377 = vadd.s32 %v369, 64
        %v378 = vadd.s32 %v369, 72
        %v379 = vadd.s32 %v369, 80
        %v380 = vadd.s32 %v369, 88
        %v381 = vadd.s32 %v369, 96
        %v382 = vadd.s32 %v369, 104
        %v383 = vadd.s32 %v369, 112
        %v384 = vadd.s32 %v369, 120
        %v385 = vstv %s367
        %v386 = vadd.s32 %v369, %v385
        %v387 = vadd.s32 %v370, %v385
        %v388 = vadd.s32 %v371, %v385
        %v389 = vadd.s32 %v372, %v385
        %v390 = vadd.s32 %v373, %v385
        %v391 = vadd.s32 %v374, %v385
        %v392 = vadd.s32 %v375, %v385
        %v393 = vadd.s32 %v376, %v385
        %v394 = vadd.s32 %v377, %v385
        %v395 = vadd.s32 %v378, %v385
        %v396 = vadd.s32 %v379, %v385
        %v397 = vadd.s32 %v380, %v385
        %v398 = vadd.s32 %v381, %v385
        %v399 = vadd.s32 %v382, %v385
        %v400 = vadd.s32 %v383, %v385
        %v401 = vadd.s32 %v384, %v385
        %v402 = vlaneseq
        %v403 = vshrl.u32 %v402, 7
        %v404 = vsub.s32 0, %v403
        %v405 = vrot.slane %v366, %v404
        %v406 = vlaneseq
        %v407 = vshrl.u32 %v406, 7
        %v408 = vsub.s32 1, %v407
        %v409 = vrot.slane %v366, %v408
        %v410 = vlaneseq
        %v411 = vshrl.u32 %v410, 7
        %v412 = vsub.s32 2, %v411
        %v413 = vrot.slane %v366, %v412
        %v414 = vlaneseq
        %v415 = vshrl.u32 %v414, 7
        %v416 = vsub.s32 3, %v415
        %v417 = vrot.slane %v366, %v416
        %v418 = vlaneseq
        %v419 = vshrl.u32 %v418, 7
        %v420 = vsub.s32 4, %v419
        %v421 = vrot.slane %v366, %v420
        %vm422 = vcmp.eq.s32.totalorder %v386, %v405
        %vm423 = vcmp.eq.s32.totalorder %v386, %v409
        %vm424 = vcmp.eq.s32.totalorder %v386, %v413
        %vm425 = vcmp.eq.s32.totalorder %v386, %v417
        %vm426 = vcmp.eq.s32.totalorder %v386, %v421
        %vm427 = vcmp.eq.s32.totalorder %v387, %v405
        %vm428 = vcmp.eq.s32.totalorder %v387, %v409
        %vm429 = vcmp.eq.s32.totalorder %v387, %v413
        %vm430 = vcmp.eq.s32.totalorder %v387, %v417
        %vm431 = vcmp.eq.s32.totalorder %v387, %v421
        %vm432 = vcmp.eq.s32.totalorder %v388, %v405
        %vm433 = vcmp.eq.s32.totalorder %v388, %v409
        %vm434 = vcmp.eq.s32.totalorder %v388, %v413
        %vm435 = vcmp.eq.s32.totalorder %v388, %v417
        %vm436 = vcmp.eq.s32.totalorder %v388, %v421
        %vm437 = vcmp.eq.s32.totalorder %v389, %v405
        %vm438 = vcmp.eq.s32.totalorder %v389, %v409
        %vm439 = vcmp.eq.s32.totalorder %v389, %v413
        %vm440 = vcmp.eq.s32.totalorder %v389, %v417
        %vm441 = vcmp.eq.s32.totalorder %v389, %v421
        %vm442 = vcmp.eq.s32.totalorder %v390, %v405
        %vm443 = vcmp.eq.s32.totalorder %v390, %v409
        %vm444 = vcmp.eq.s32.totalorder %v390, %v413
        %vm445 = vcmp.eq.s32.totalorder %v390, %v417
        %vm446 = vcmp.eq.s32.totalorder %v390, %v421
        %vm447 = vcmp.eq.s32.totalorder %v391, %v405
        %vm448 = vcmp.eq.s32.totalorder %v391, %v409
        %vm449 = vcmp.eq.s32.totalorder %v391, %v413
        %vm450 = vcmp.eq.s32.totalorder %v391, %v417
        %vm451 = vcmp.eq.s32.totalorder %v391, %v421
        %vm452 = vcmp.eq.s32.totalorder %v392, %v405
        %vm453 = vcmp.eq.s32.totalorder %v392, %v409
        %vm454 = vcmp.eq.s32.totalorder %v392, %v413
        %vm455 = vcmp.eq.s32.totalorder %v392, %v417
        %vm456 = vcmp.eq.s32.totalorder %v392, %v421
        %vm457 = vcmp.eq.s32.totalorder %v393, %v405
        %vm458 = vcmp.eq.s32.totalorder %v393, %v409
        %vm459 = vcmp.eq.s32.totalorder %v393, %v413
        %vm460 = vcmp.eq.s32.totalorder %v393, %v417
        %vm461 = vcmp.eq.s32.totalorder %v393, %v421
        %vm462 = vcmp.eq.s32.totalorder %v394, %v405
        %vm463 = vcmp.eq.s32.totalorder %v394, %v409
        %vm464 = vcmp.eq.s32.totalorder %v394, %v413
        %vm465 = vcmp.eq.s32.totalorder %v394, %v417
        %vm466 = vcmp.eq.s32.totalorder %v394, %v421
        %vm467 = vcmp.eq.s32.totalorder %v395, %v405
        %vm468 = vcmp.eq.s32.totalorder %v395, %v409
        %vm469 = vcmp.eq.s32.totalorder %v395, %v413
        %vm470 = vcmp.eq.s32.totalorder %v395, %v417
        %vm471 = vcmp.eq.s32.totalorder %v395, %v421
        %vm472 = vcmp.eq.s32.totalorder %v396, %v405
        %vm473 = vcmp.eq.s32.totalorder %v396, %v409
        %vm474 = vcmp.eq.s32.totalorder %v396, %v413
        %vm475 = vcmp.eq.s32.totalorder %v396, %v417
        %vm476 = vcmp.eq.s32.totalorder %v396, %v421
        %vm477 = vcmp.eq.s32.totalorder %v397, %v405
        %vm478 = vcmp.eq.s32.totalorder %v397, %v409
        %vm479 = vcmp.eq.s32.totalorder %v397, %v413
        %vm480 = vcmp.eq.s32.totalorder %v397, %v417
        %vm481 = vcmp.eq.s32.totalorder %v397, %v421
        %vm482 = vcmp.eq.s32.totalorder %v398, %v405
        %vm483 = vcmp.eq.s32.totalorder %v398, %v409
        %vm484 = vcmp.eq.s32.totalorder %v398, %v413
        %vm485 = vcmp.eq.s32.totalorder %v398, %v417
        %vm486 = vcmp.eq.s32.totalorder %v398, %v421
        %vm487 = vcmp.eq.s32.totalorder %v399, %v405
        %vm488 = vcmp.eq.s32.totalorder %v399, %v409
        %vm489 = vcmp.eq.s32.totalorder %v399, %v413
        %vm490 = vcmp.eq.s32.totalorder %v399, %v417
        %vm491 = vcmp.eq.s32.totalorder %v399, %v421
        %vm492 = vcmp.eq.s32.totalorder %v400, %v405
        %vm493 = vcmp.eq.s32.totalorder %v400, %v409
        %vm494 = vcmp.eq.s32.totalorder %v400, %v413
        %vm495 = vcmp.eq.s32.totalorder %v400, %v417
        %vm496 = vcmp.eq.s32.totalorder %v400, %v421
        %vm497 = vcmp.eq.s32.totalorder %v401, %v405
        %vm498 = vcmp.eq.s32.totalorder %v401, %v409
        %vm499 = vcmp.eq.s32.totalorder %v401, %v413
        %vm500 = vcmp.eq.s32.totalorder %v401, %v417
        %vm501 = vcmp.eq.s32.totalorder %v401, %v421
        %v502 = vsel %vm422, 1, 0
        %v503 = vsel %vm423, 1, 0
        %v504 = vsel %vm424, 1, 0
        %v505 = vsel %vm425, 1, 0
        %v506 = vsel %vm426, 1, 0
        %v507 = vsel %vm427, 1, 0
        %v508 = vsel %vm428, 1, 0
        %v509 = vsel %vm429, 1, 0
        %v510 = vsel %vm430, 1, 0
        %v511 = vsel %vm431, 1, 0
        %v512 = vsel %vm432, 1, 0
        %v513 = vsel %vm433, 1, 0
        %v514 = vsel %vm434, 1, 0
        %v515 = vsel %vm435, 1, 0
        %v516 = vsel %vm436, 1, 0
        %v517 = vsel %vm437, 1, 0
        %v518 = vsel %vm438, 1, 0
        %v519 = vsel %vm439, 1, 0
        %v520 = vsel %vm440, 1, 0
        %v521 = vsel %vm441, 1, 0
        %v522 = vsel %vm442, 1, 0
        %v523 = vsel %vm443, 1, 0
        %v524 = vsel %vm444, 1, 0
        %v525 = vsel %vm445, 1, 0
        %v526 = vsel %vm446, 1, 0
        %v527 = vsel %vm447, 1, 0
        %v528 = vsel %vm448, 1, 0
        %v529 = vsel %vm449, 1, 0
        %v530 = vsel %vm450, 1, 0
        %v531 = vsel %vm451, 1, 0
        %v532 = vsel %vm452, 1, 0
        %v533 = vsel %vm453, 1, 0
        %v534 = vsel %vm454, 1, 0
        %v535 = vsel %vm455, 1, 0
        %v536 = vsel %vm456, 1, 0
        %v537 = vsel %vm457, 1, 0
        %v538 = vsel %vm458, 1, 0
        %v539 = vsel %vm459, 1, 0
        %v540 = vsel %vm460, 1, 0
        %v541 = vsel %vm461, 1, 0
        %v542 = vsel %vm462, 1, 0
        %v543 = vsel %vm463, 1, 0
        %v544 = vsel %vm464, 1, 0
        %v545 = vsel %vm465, 1, 0
        %v546 = vsel %vm466, 1, 0
        %v547 = vsel %vm467, 1, 0
        %v548 = vsel %vm468, 1, 0
        %v549 = vsel %vm469, 1, 0
        %v550 = vsel %vm470, 1, 0
        %v551 = vsel %vm471, 1, 0
        %v552 = vsel %vm472, 1, 0
        %v553 = vsel %vm473, 1, 0
        %v554 = vsel %vm474, 1, 0
        %v555 = vsel %vm475, 1, 0
        %v556 = vsel %vm476, 1, 0
        %v557 = vsel %vm477, 1, 0
        %v558 = vsel %vm478, 1, 0
        %v559 = vsel %vm479, 1, 0
        %v560 = vsel %vm480, 1, 0
        %v561 = vsel %vm481, 1, 0
        %v562 = vsel %vm482, 1, 0
        %v563 = vsel %vm483, 1, 0
        %v564 = vsel %vm484, 1, 0
        %v565 = vsel %vm485, 1, 0
        %v566 = vsel %vm486, 1, 0
        %v567 = vsel %vm487, 1, 0
        %v568 = vsel %vm488, 1, 0
        %v569 = vsel %vm489, 1, 0
        %v570 = vsel %vm490, 1, 0
        %v571 = vsel %vm491, 1, 0
        %v572 = vsel %vm492, 1, 0
        %v573 = vsel %vm493, 1, 0
        %v574 = vsel %vm494, 1, 0
        %v575 = vsel %vm495, 1, 0
        %v576 = vsel %vm496, 1, 0
        %v577 = vsel %vm497, 1, 0
        %v578 = vsel %vm498, 1, 0
        %v579 = vsel %vm499, 1, 0
        %v580 = vsel %vm500, 1, 0
        %v581 = vsel %vm501, 1, 0
        %v582 = vcvt.s32.f32 %v502
        %v583 = vcvt.s32.f32 %v503
        %v584 = vcvt.s32.f32 %v504
        %v585 = vcvt.s32.f32 %v505
        %v586 = vcvt.s32.f32 %v506
        %v587 = vcvt.s32.f32 %v507
        %v588 = vcvt.s32.f32 %v508
        %v589 = vcvt.s32.f32 %v509
        %v590 = vcvt.s32.f32 %v510
        %v591 = vcvt.s32.f32 %v511
        %v592 = vcvt.s32.f32 %v512
        %v593 = vcvt.s32.f32 %v513
        %v594 = vcvt.s32.f32 %v514
        %v595 = vcvt.s32.f32 %v515
        %v596 = vcvt.s32.f32 %v516
        %v597 = vcvt.s32.f32 %v517
        %v598 = vcvt.s32.f32 %v518
        %v599 = vcvt.s32.f32 %v519
        %v600 = vcvt.s32.f32 %v520
        %v601 = vcvt.s32.f32 %v521
        %v602 = vcvt.s32.f32 %v522
        %v603 = vcvt.s32.f32 %v523
        %v604 = vcvt.s32.f32 %v524
        %v605 = vcvt.s32.f32 %v525
        %v606 = vcvt.s32.f32 %v526
        %v607 = vcvt.s32.f32 %v527
        %v608 = vcvt.s32.f32 %v528
        %v609 = vcvt.s32.f32 %v529
        %v610 = vcvt.s32.f32 %v530
        %v611 = vcvt.s32.f32 %v531
        %v612 = vcvt.s32.f32 %v532
        %v613 = vcvt.s32.f32 %v533
        %v614 = vcvt.s32.f32 %v534
        %v615 = vcvt.s32.f32 %v535
        %v616 = vcvt.s32.f32 %v536
        %v617 = vcvt.s32.f32 %v537
        %v618 = vcvt.s32.f32 %v538
        %v619 = vcvt.s32.f32 %v539
        %v620 = vcvt.s32.f32 %v540
        %v621 = vcvt.s32.f32 %v541
        %v622 = vcvt.s32.f32 %v542
        %v623 = vcvt.s32.f32 %v543
        %v624 = vcvt.s32.f32 %v544
        %v625 = vcvt.s32.f32 %v545
        %v626 = vcvt.s32.f32 %v546
        %v627 = vcvt.s32.f32 %v547
        %v628 = vcvt.s32.f32 %v548
        %v629 = vcvt.s32.f32 %v549
        %v630 = vcvt.s32.f32 %v550
        %v631 = vcvt.s32.f32 %v551
        %v632 = vcvt.s32.f32 %v552
        %v633 = vcvt.s32.f32 %v553
        %v634 = vcvt.s32.f32 %v554
        %v635 = vcvt.s32.f32 %v555
        %v636 = vcvt.s32.f32 %v556
        %v637 = vcvt.s32.f32 %v557
        %v638 = vcvt.s32.f32 %v558
        %v639 = vcvt.s32.f32 %v559
        %v640 = vcvt.s32.f32 %v560
        %v641 = vcvt.s32.f32 %v561
        %v642 = vcvt.s32.f32 %v562
        %v643 = vcvt.s32.f32 %v563
        %v644 = vcvt.s32.f32 %v564
        %v645 = vcvt.s32.f32 %v565
        %v646 = vcvt.s32.f32 %v566
        %v647 = vcvt.s32.f32 %v567
        %v648 = vcvt.s32.f32 %v568
        %v649 = vcvt.s32.f32 %v569
        %v650 = vcvt.s32.f32 %v570
        %v651 = vcvt.s32.f32 %v571
        %v652 = vcvt.s32.f32 %v572
        %v653 = vcvt.s32.f32 %v573
        %v654 = vcvt.s32.f32 %v574
        %v655 = vcvt.s32.f32 %v575
        %v656 = vcvt.s32.f32 %v576
        %v657 = vcvt.s32.f32 %v577
        %v658 = vcvt.s32.f32 %v578
        %v659 = vcvt.s32.f32 %v579
        %v660 = vcvt.s32.f32 %v580
        %v661 = vcvt.s32.f32 %v581
        %v662 = vld [vmem:[#allocation2] sm:$0xff]
        %v663 = vld [vmem:[#allocation2 + $0x8] sm:$0xff]
        %v664 = vld [vmem:[#allocation2 + $0x10] sm:$0xff]
        %v665 = vld [vmem:[#allocation2 + $0x18] sm:$0xff]
        %v666 = vld [vmem:[#allocation2 + $0x20] sm:$0xff]
        %v667 = vld [vmem:[#allocation2 + $0x28] sm:$0xff]
        %v668 = vld [vmem:[#allocation2 + $0x30] sm:$0xff]
        %v669 = vld [vmem:[#allocation2 + $0x38] sm:$0xff]
        %v670 = vld [vmem:[#allocation2 + $0x40] sm:$0xff]
        %v671 = vld [vmem:[#allocation2 + $0x48] sm:$0xff]
        %v672 = vld [vmem:[#allocation2 + $0x50] sm:$0xff]
        %v673 = vld [vmem:[#allocation2 + $0x58] sm:$0xff]
        %v674 = vld [vmem:[#allocation2 + $0x60] sm:$0xff]
        %v675 = vld [vmem:[#allocation2 + $0x68] sm:$0xff]
        %v676 = vld [vmem:[#allocation2 + $0x70] sm:$0xff]
        %v677 = vld [vmem:[#allocation2 + $0x78] sm:$0xff]
        %v678 = vld [vmem:[#allocation4] sm:$0xff]
        %v679 = vld [vmem:[#allocation4 + $0x8] sm:$0xff]
        %v680 = vld [vmem:[#allocation4 + $0x10] sm:$0xff]
        %v681 = vld [vmem:[#allocation4 + $0x18] sm:$0xff]
        %v682 = vld [vmem:[#allocation4 + $0x20] sm:$0xff]
        %v683 = vld [vmem:[#allocation4 + $0x28] sm:$0xff]
        %v684 = vld [vmem:[#allocation4 + $0x30] sm:$0xff]
        %v685 = vld [vmem:[#allocation4 + $0x38] sm:$0xff]
        %v686 = vld [vmem:[#allocation4 + $0x40] sm:$0xff]
        %v687 = vld [vmem:[#allocation4 + $0x48] sm:$0xff]
        %v688 = vld [vmem:[#allocation4 + $0x50] sm:$0xff]
        %v689 = vld [vmem:[#allocation4 + $0x58] sm:$0xff]
        %v690 = vld [vmem:[#allocation4 + $0x60] sm:$0xff]
        %v691 = vld [vmem:[#allocation4 + $0x68] sm:$0xff]
        %v692 = vld [vmem:[#allocation4 + $0x70] sm:$0xff]
        %v693 = vld [vmem:[#allocation4 + $0x78] sm:$0xff]
        %v694 = vld [vmem:[#allocation4 + $0x80] sm:$0xff]
        %v695 = vld [vmem:[#allocation4 + $0x88] sm:$0xff]
        %v696 = vld [vmem:[#allocation4 + $0x90] sm:$0xff]
        %v697 = vld [vmem:[#allocation4 + $0x98] sm:$0xff]
        %v698 = vld [vmem:[#allocation4 + $0xa0] sm:$0xff]
        %v699 = vld [vmem:[#allocation4 + $0xa8] sm:$0xff]
        %v700 = vld [vmem:[#allocation4 + $0xb0] sm:$0xff]
        %v701 = vld [vmem:[#allocation4 + $0xb8] sm:$0xff]
        %v702 = vld [vmem:[#allocation4 + $0xc0] sm:$0xff]
        %v703 = vld [vmem:[#allocation4 + $0xc8] sm:$0xff]
        %v704 = vld [vmem:[#allocation4 + $0xd0] sm:$0xff]
        %v705 = vld [vmem:[#allocation4 + $0xd8] sm:$0xff]
        %v706 = vld [vmem:[#allocation4 + $0xe0] sm:$0xff]
        %v707 = vld [vmem:[#allocation4 + $0xe8] sm:$0xff]
        %v708 = vld [vmem:[#allocation4 + $0xf0] sm:$0xff]
        %v709 = vld [vmem:[#allocation4 + $0xf8] sm:$0xff]
        %v710 = vld [vmem:[#allocation4 + $0x100] sm:$0xff]
        %v711 = vld [vmem:[#allocation4 + $0x108] sm:$0xff]
        %v712 = vld [vmem:[#allocation4 + $0x110] sm:$0xff]
        %v713 = vld [vmem:[#allocation4 + $0x118] sm:$0xff]
        %v714 = vld [vmem:[#allocation4 + $0x120] sm:$0xff]
        %v715 = vld [vmem:[#allocation4 + $0x128] sm:$0xff]
        %v716 = vld [vmem:[#allocation4 + $0x130] sm:$0xff]
        %v717 = vld [vmem:[#allocation4 + $0x138] sm:$0xff]
        %v718 = vld [vmem:[#allocation4 + $0x140] sm:$0xff]
        %v719 = vld [vmem:[#allocation4 + $0x148] sm:$0xff]
        %v720 = vld [vmem:[#allocation4 + $0x150] sm:$0xff]
        %v721 = vld [vmem:[#allocation4 + $0x158] sm:$0xff]
        %v722 = vld [vmem:[#allocation4 + $0x160] sm:$0xff]
        %v723 = vld [vmem:[#allocation4 + $0x168] sm:$0xff]
        %v724 = vld [vmem:[#allocation4 + $0x170] sm:$0xff]
        %v725 = vld [vmem:[#allocation4 + $0x178] sm:$0xff]
        %v726 = vld [vmem:[#allocation4 + $0x180] sm:$0xff]
        %v727 = vld [vmem:[#allocation4 + $0x188] sm:$0xff]
        %v728 = vld [vmem:[#allocation4 + $0x190] sm:$0xff]
        %v729 = vld [vmem:[#allocation4 + $0x198] sm:$0xff]
        %v730 = vld [vmem:[#allocation4 + $0x1a0] sm:$0xff]
        %v731 = vld [vmem:[#allocation4 + $0x1a8] sm:$0xff]
        %v732 = vld [vmem:[#allocation4 + $0x1b0] sm:$0xff]
        %v733 = vld [vmem:[#allocation4 + $0x1b8] sm:$0xff]
        %v734 = vld [vmem:[#allocation4 + $0x1c0] sm:$0xff]
        %v735 = vld [vmem:[#allocation4 + $0x1c8] sm:$0xff]
        %v736 = vld [vmem:[#allocation4 + $0x1d0] sm:$0xff]
        %v737 = vld [vmem:[#allocation4 + $0x1d8] sm:$0xff]
        %v738 = vld [vmem:[#allocation4 + $0x1e0] sm:$0xff]
        %v739 = vld [vmem:[#allocation4 + $0x1e8] sm:$0xff]
        %v740 = vld [vmem:[#allocation4 + $0x1f0] sm:$0xff]
        %v741 = vld [vmem:[#allocation4 + $0x1f8] sm:$0xff]
        %v742 = vld [vmem:[#allocation4 + $0x200] sm:$0xff]
        %v743 = vld [vmem:[#allocation4 + $0x208] sm:$0xff]
        %v744 = vld [vmem:[#allocation4 + $0x210] sm:$0xff]
        %v745 = vld [vmem:[#allocation4 + $0x218] sm:$0xff]
        %v746 = vld [vmem:[#allocation4 + $0x220] sm:$0xff]
        %v747 = vld [vmem:[#allocation4 + $0x228] sm:$0xff]
        %v748 = vld [vmem:[#allocation4 + $0x230] sm:$0xff]
        %v749 = vld [vmem:[#allocation4 + $0x238] sm:$0xff]
        %v750 = vld [vmem:[#allocation4 + $0x240] sm:$0xff]
        %v751 = vld [vmem:[#allocation4 + $0x248] sm:$0xff]
        %v752 = vld [vmem:[#allocation4 + $0x250] sm:$0xff]
        %v753 = vld [vmem:[#allocation4 + $0x258] sm:$0xff]
        %v754 = vld [vmem:[#allocation4 + $0x260] sm:$0xff]
        %v755 = vld [vmem:[#allocation4 + $0x268] sm:$0xff]
        %v756 = vld [vmem:[#allocation4 + $0x270] sm:$0xff]
        %v757 = vld [vmem:[#allocation4 + $0x278] sm:$0xff]
        %758 = vmatprep.subr.mxu0 0.0
        %759 = vmatpush1.msra.mxu0 %v693
        %760 = vmatprep.subr.mxu0 0.0
        %761 = vmatpush1.msra.mxu0 %v692
        %762 = vmatprep.subr.mxu0 0.0
        %763 = vmatpush1.msra.mxu0 %v691
        %764 = vmatprep.subr.mxu0 0.0
        %765 = vmatpush1.msra.mxu0 %v690
        %766 = vmatprep.subr.mxu0 0.0
        %767 = vmatpush1.msra.mxu0 %v689
        %768 = vmatprep.subr.mxu0 0.0
        %769 = vmatpush1.msra.mxu0 %v688
        %770 = vmatprep.subr.mxu0 0.0
        %771 = vmatpush1.msra.mxu0 %v687
        %772 = vmatprep.subr.mxu0 0.0
        %773 = vmatpush1.msra.mxu0 %v686
        %774 = vmatprep.subr.mxu0 0.0
        %775 = vmatpush1.msra.mxu0 %v685
        %776 = vmatprep.subr.mxu0 0.0
        %777 = vmatpush1.msra.mxu0 %v684
        %778 = vmatprep.subr.mxu0 0.0
        %779 = vmatpush1.msra.mxu0 %v683
        %780 = vmatprep.subr.mxu0 0.0
        %781 = vmatpush1.msra.mxu0 %v682
        %782 = vmatprep.subr.mxu0 0.0
        %783 = vmatpush1.msra.mxu0 %v681
        %784 = vmatprep.subr.mxu0 0.0
        %785 = vmatpush1.msra.mxu0 %v680
        %786 = vmatprep.subr.mxu0 0.0
        %787 = vmatpush1.msra.mxu0 %v679
        %788 = vmatprep.subr.mxu0 0.0
        %789 = vmatpush1.msra.mxu0 %v678
        %790 = vmatprep.subr.mxu0 0.0
        %791 = vmatpush2.msra.mxu0 %v709
        %792 = vmatprep.subr.mxu0 0.0
        %793 = vmatpush2.msra.mxu0 %v708
        %794 = vmatprep.subr.mxu0 0.0
        %795 = vmatpush2.msra.mxu0 %v707
        %796 = vmatprep.subr.mxu0 0.0
        %797 = vmatpush2.msra.mxu0 %v706
        %798 = vmatprep.subr.mxu0 0.0
        %799 = vmatpush2.msra.mxu0 %v705
        %800 = vmatprep.subr.mxu0 0.0
        %801 = vmatpush2.msra.mxu0 %v704
        %802 = vmatprep.subr.mxu0 0.0
        %803 = vmatpush2.msra.mxu0 %v703
        %804 = vmatprep.subr.mxu0 0.0
        %805 = vmatpush2.msra.mxu0 %v702
        %806 = vmatprep.subr.mxu0 0.0
        %807 = vmatpush2.msra.mxu0 %v701
        %808 = vmatprep.subr.mxu0 0.0
        %809 = vmatpush2.msra.mxu0 %v700
        %810 = vmatprep.subr.mxu0 0.0
        %811 = vmatpush2.msra.mxu0 %v699
        %812 = vmatprep.subr.mxu0 0.0
        %813 = vmatpush2.msra.mxu0 %v698
        %814 = vmatprep.subr.mxu0 0.0
        %815 = vmatpush2.msra.mxu0 %v697
        %816 = vmatprep.subr.mxu0 0.0
        %817 = vmatpush2.msra.mxu0 %v696
        %818 = vmatprep.subr.mxu0 0.0
        %819 = vmatpush2.msra.mxu0 %v695
        %820 = vmatprep.subr.mxu0 0.0
        %821 = vmatpush2.msra.mxu0 %v694
        %822 = vmatprep.mubr.f32.mxu0 %v583
        %823 = vmatmul.mubr.f32.gmra.mxu0 %v582
        %v824 = vpop.f32.mrf.mxu0
        %v825 = vadd.f32 0.0, %v824
        %v826 = vpop.f32.mrf.mxu0
        %827 = vmatprep.mubr.f32.mxu0 %v588
        %828 = vmatmul.mubr.f32.gmra.mxu0 %v587
        %v829 = vpop.f32.mrf.mxu0
        %v830 = vadd.f32 0.0, %v829
        %v831 = vpop.f32.mrf.mxu0
        %832 = vmatprep.mubr.f32.mxu0 %v593
        %833 = vmatmul.mubr.f32.gmra.mxu0 %v592
        %v834 = vpop.f32.mrf.mxu0
        %v835 = vadd.f32 0.0, %v834
        %v836 = vpop.f32.mrf.mxu0
        %837 = vmatprep.mubr.f32.mxu0 %v598
        %838 = vmatmul.mubr.f32.gmra.mxu0 %v597
        %v839 = vpop.f32.mrf.mxu0
        %v840 = vadd.f32 0.0, %v839
        %v841 = vpop.f32.mrf.mxu0
        %842 = vmatprep.mubr.f32.mxu0 %v603
        %843 = vmatmul.mubr.f32.gmra.mxu0 %v602
        %v844 = vpop.f32.mrf.mxu0
        %v845 = vadd.f32 0.0, %v844
        %v846 = vpop.f32.mrf.mxu0
        %847 = vmatprep.mubr.f32.mxu0 %v608
        %848 = vmatmul.mubr.f32.gmra.mxu0 %v607
        %v849 = vpop.f32.mrf.mxu0
        %v850 = vadd.f32 0.0, %v849
        %v851 = vpop.f32.mrf.mxu0
        %852 = vmatprep.mubr.f32.mxu0 %v613
        %853 = vmatmul.mubr.f32.gmra.mxu0 %v612
        %v854 = vpop.f32.mrf.mxu0
        %v855 = vadd.f32 0.0, %v854
        %v856 = vpop.f32.mrf.mxu0
        %857 = vmatprep.mubr.f32.mxu0 %v618
        %858 = vmatmul.mubr.f32.gmra.mxu0 %v617
        %v859 = vpop.f32.mrf.mxu0
        %v860 = vadd.f32 0.0, %v859
        %v861 = vpop.f32.mrf.mxu0
        %862 = vmatprep.mubr.f32.mxu0 %v623
        %863 = vmatmul.mubr.f32.gmra.mxu0 %v622
        %v864 = vpop.f32.mrf.mxu0
        %v865 = vadd.f32 0.0, %v864
        %v866 = vpop.f32.mrf.mxu0
        %867 = vmatprep.mubr.f32.mxu0 %v628
        %868 = vmatmul.mubr.f32.gmra.mxu0 %v627
        %v869 = vpop.f32.mrf.mxu0
        %v870 = vadd.f32 0.0, %v869
        %v871 = vpop.f32.mrf.mxu0
        %872 = vmatprep.mubr.f32.mxu0 %v633
        %873 = vmatmul.mubr.f32.gmra.mxu0 %v632
        %v874 = vpop.f32.mrf.mxu0
        %v875 = vadd.f32 0.0, %v874
        %v876 = vpop.f32.mrf.mxu0
        %877 = vmatprep.mubr.f32.mxu0 %v638
        %878 = vmatmul.mubr.f32.gmra.mxu0 %v637
        %v879 = vpop.f32.mrf.mxu0
        %v880 = vadd.f32 0.0, %v879
        %v881 = vpop.f32.mrf.mxu0
        %882 = vmatprep.mubr.f32.mxu0 %v643
        %883 = vmatmul.mubr.f32.gmra.mxu0 %v642
        %v884 = vpop.f32.mrf.mxu0
        %v885 = vadd.f32 0.0, %v884
        %v886 = vpop.f32.mrf.mxu0
        %887 = vmatprep.mubr.f32.mxu0 %v648
        %888 = vmatmul.mubr.f32.gmra.mxu0 %v647
        %v889 = vpop.f32.mrf.mxu0
        %v890 = vadd.f32 0.0, %v889
        %v891 = vpop.f32.mrf.mxu0
        %892 = vmatprep.mubr.f32.mxu0 %v653
        %893 = vmatmul.mubr.f32.gmra.mxu0 %v652
        %v894 = vpop.f32.mrf.mxu0
        %v895 = vadd.f32 0.0, %v894
        %v896 = vpop.f32.mrf.mxu0
        %897 = vmatprep.mubr.f32.mxu0 %v658
        %898 = vmatmul.mubr.f32.gmra.mxu0 %v657
        %v899 = vpop.f32.mrf.mxu0
        %v900 = vadd.f32 0.0, %v899
        %v901 = vpop.f32.mrf.mxu0
        %902 = vdwg.mxu0
        %903 = vmatprep.subr.mxu0 0.0
        %904 = vmatpush1.msra.mxu0 %v725
        %905 = vmatprep.subr.mxu0 0.0
        %906 = vmatpush1.msra.mxu0 %v724
        %907 = vmatprep.subr.mxu0 0.0
        %908 = vmatpush1.msra.mxu0 %v723
        %909 = vmatprep.subr.mxu0 0.0
        %910 = vmatpush1.msra.mxu0 %v722
        %911 = vmatprep.subr.mxu0 0.0
        %912 = vmatpush1.msra.mxu0 %v721
        %913 = vmatprep.subr.mxu0 0.0
        %914 = vmatpush1.msra.mxu0 %v720
        %915 = vmatprep.subr.mxu0 0.0
        %916 = vmatpush1.msra.mxu0 %v719
        %917 = vmatprep.subr.mxu0 0.0
        %918 = vmatpush1.msra.mxu0 %v718
        %919 = vmatprep.subr.mxu0 0.0
        %920 = vmatpush1.msra.mxu0 %v717
        %921 = vmatprep.subr.mxu0 0.0
        %922 = vmatpush1.msra.mxu0 %v716
        %923 = vmatprep.subr.mxu0 0.0
        %924 = vmatpush1.msra.mxu0 %v715
        %925 = vmatprep.subr.mxu0 0.0
        %926 = vmatpush1.msra.mxu0 %v714
        %927 = vmatprep.subr.mxu0 0.0
        %928 = vmatpush1.msra.mxu0 %v713
        %929 = vmatprep.subr.mxu0 0.0
        %930 = vmatpush1.msra.mxu0 %v712
        %931 = vmatprep.subr.mxu0 0.0
        %932 = vmatpush1.msra.mxu0 %v711
        %933 = vmatprep.subr.mxu0 0.0
        %934 = vmatpush1.msra.mxu0 %v710
        %935 = vmatprep.subr.mxu0 0.0
        %936 = vmatpush2.msra.mxu0 %v741
        %937 = vmatprep.subr.mxu0 0.0
        %938 = vmatpush2.msra.mxu0 %v740
        %939 = vmatprep.subr.mxu0 0.0
        %940 = vmatpush2.msra.mxu0 %v739
        %941 = vmatprep.subr.mxu0 0.0
        %942 = vmatpush2.msra.mxu0 %v738
        %943 = vmatprep.subr.mxu0 0.0
        %944 = vmatpush2.msra.mxu0 %v737
        %945 = vmatprep.subr.mxu0 0.0
        %946 = vmatpush2.msra.mxu0 %v736
        %947 = vmatprep.subr.mxu0 0.0
        %948 = vmatpush2.msra.mxu0 %v735
        %949 = vmatprep.subr.mxu0 0.0
        %950 = vmatpush2.msra.mxu0 %v734
        %951 = vmatprep.subr.mxu0 0.0
        %952 = vmatpush2.msra.mxu0 %v733
        %953 = vmatprep.subr.mxu0 0.0
        %954 = vmatpush2.msra.mxu0 %v732
        %955 = vmatprep.subr.mxu0 0.0
        %956 = vmatpush2.msra.mxu0 %v731
        %957 = vmatprep.subr.mxu0 0.0
        %958 = vmatpush2.msra.mxu0 %v730
        %959 = vmatprep.subr.mxu0 0.0
        %960 = vmatpush2.msra.mxu0 %v729
        %961 = vmatprep.subr.mxu0 0.0
        %962 = vmatpush2.msra.mxu0 %v728
        %963 = vmatprep.subr.mxu0 0.0
        %964 = vmatpush2.msra.mxu0 %v727
        %965 = vmatprep.subr.mxu0 0.0
        %966 = vmatpush2.msra.mxu0 %v726
        %967 = vmatprep.mubr.f32.mxu0 %v585
        %968 = vmatmul.mubr.f32.gmra.mxu0 %v584
        %v969 = vpop.f32.mrf.mxu0
        %v970 = vadd.f32 %v825, %v969
        %v971 = vpop.f32.mrf.mxu0
        %972 = vmatprep.mubr.f32.mxu0 %v590
        %973 = vmatmul.mubr.f32.gmra.mxu0 %v589
        %v974 = vpop.f32.mrf.mxu0
        %v975 = vadd.f32 %v830, %v974
        %v976 = vpop.f32.mrf.mxu0
        %977 = vmatprep.mubr.f32.mxu0 %v595
        %978 = vmatmul.mubr.f32.gmra.mxu0 %v594
        %v979 = vpop.f32.mrf.mxu0
        %v980 = vadd.f32 %v835, %v979
        %v981 = vpop.f32.mrf.mxu0
        %982 = vmatprep.mubr.f32.mxu0 %v600
        %983 = vmatmul.mubr.f32.gmra.mxu0 %v599
        %v984 = vpop.f32.mrf.mxu0
        %v985 = vadd.f32 %v840, %v984
        %v986 = vpop.f32.mrf.mxu0
        %987 = vmatprep.mubr.f32.mxu0 %v605
        %988 = vmatmul.mubr.f32.gmra.mxu0 %v604
        %v989 = vpop.f32.mrf.mxu0
        %v990 = vadd.f32 %v845, %v989
        %v991 = vpop.f32.mrf.mxu0
        %992 = vmatprep.mubr.f32.mxu0 %v610
        %993 = vmatmul.mubr.f32.gmra.mxu0 %v609
        %v994 = vpop.f32.mrf.mxu0
        %v995 = vadd.f32 %v850, %v994
        %v996 = vpop.f32.mrf.mxu0
        %997 = vmatprep.mubr.f32.mxu0 %v615
        %998 = vmatmul.mubr.f32.gmra.mxu0 %v614
        %v999 = vpop.f32.mrf.mxu0
        %v1000 = vadd.f32 %v855, %v999
        %v1001 = vpop.f32.mrf.mxu0
        %1002 = vmatprep.mubr.f32.mxu0 %v620
        %1003 = vmatmul.mubr.f32.gmra.mxu0 %v619
        %v1004 = vpop.f32.mrf.mxu0
        %v1005 = vadd.f32 %v860, %v1004
        %v1006 = vpop.f32.mrf.mxu0
        %1007 = vmatprep.mubr.f32.mxu0 %v625
        %1008 = vmatmul.mubr.f32.gmra.mxu0 %v624
        %v1009 = vpop.f32.mrf.mxu0
        %v1010 = vadd.f32 %v865, %v1009
        %v1011 = vpop.f32.mrf.mxu0
        %1012 = vmatprep.mubr.f32.mxu0 %v630
        %1013 = vmatmul.mubr.f32.gmra.mxu0 %v629
        %v1014 = vpop.f32.mrf.mxu0
        %v1015 = vadd.f32 %v870, %v1014
        %v1016 = vpop.f32.mrf.mxu0
        %1017 = vmatprep.mubr.f32.mxu0 %v635
        %1018 = vmatmul.mubr.f32.gmra.mxu0 %v634
        %v1019 = vpop.f32.mrf.mxu0
        %v1020 = vadd.f32 %v875, %v1019
        %v1021 = vpop.f32.mrf.mxu0
        %1022 = vmatprep.mubr.f32.mxu0 %v640
        %1023 = vmatmul.mubr.f32.gmra.mxu0 %v639
        %v1024 = vpop.f32.mrf.mxu0
        %v1025 = vadd.f32 %v880, %v1024
        %v1026 = vpop.f32.mrf.mxu0
        %1027 = vmatprep.mubr.f32.mxu0 %v645
        %1028 = vmatmul.mubr.f32.gmra.mxu0 %v644
        %v1029 = vpop.f32.mrf.mxu0
        %v1030 = vadd.f32 %v885, %v1029
        %v1031 = vpop.f32.mrf.mxu0
        %1032 = vmatprep.mubr.f32.mxu0 %v650
        %1033 = vmatmul.mubr.f32.gmra.mxu0 %v649
        %v1034 = vpop.f32.mrf.mxu0
        %v1035 = vadd.f32 %v890, %v1034
        %v1036 = vpop.f32.mrf.mxu0
        %1037 = vmatprep.mubr.f32.mxu0 %v655
        %1038 = vmatmul.mubr.f32.gmra.mxu0 %v654
        %v1039 = vpop.f32.mrf.mxu0
        %v1040 = vadd.f32 %v895, %v1039
        %v1041 = vpop.f32.mrf.mxu0
        %1042 = vmatprep.mubr.f32.mxu0 %v660
        %1043 = vmatmul.mubr.f32.gmra.mxu0 %v659
        %v1044 = vpop.f32.mrf.mxu0
        %v1045 = vadd.f32 %v900, %v1044
        %v1046 = vpop.f32.mrf.mxu0
        %1047 = vdwg.mxu0
        %1048 = vmatprep.subr.mxu0 0.0
        %1049 = vmatpush1.msra.mxu0 %v757
        %1050 = vmatprep.subr.mxu0 0.0
        %1051 = vmatpush1.msra.mxu0 %v756
        %1052 = vmatprep.subr.mxu0 0.0
        %1053 = vmatpush1.msra.mxu0 %v755
        %1054 = vmatprep.subr.mxu0 0.0
        %1055 = vmatpush1.msra.mxu0 %v754
        %1056 = vmatprep.subr.mxu0 0.0
        %1057 = vmatpush1.msra.mxu0 %v753
        %1058 = vmatprep.subr.mxu0 0.0
        %1059 = vmatpush1.msra.mxu0 %v752
        %1060 = vmatprep.subr.mxu0 0.0
        %1061 = vmatpush1.msra.mxu0 %v751
        %1062 = vmatprep.subr.mxu0 0.0
        %1063 = vmatpush1.msra.mxu0 %v750
        %1064 = vmatprep.subr.mxu0 0.0
        %1065 = vmatpush1.msra.mxu0 %v749
        %1066 = vmatprep.subr.mxu0 0.0
        %1067 = vmatpush1.msra.mxu0 %v748
        %1068 = vmatprep.subr.mxu0 0.0
        %1069 = vmatpush1.msra.mxu0 %v747
        %1070 = vmatprep.subr.mxu0 0.0
        %1071 = vmatpush1.msra.mxu0 %v746
        %1072 = vmatprep.subr.mxu0 0.0
        %1073 = vmatpush1.msra.mxu0 %v745
        %1074 = vmatprep.subr.mxu0 0.0
        %1075 = vmatpush1.msra.mxu0 %v744
        %1076 = vmatprep.subr.mxu0 0.0
        %1077 = vmatpush1.msra.mxu0 %v743
        %1078 = vmatprep.subr.mxu0 0.0
        %1079 = vmatpush1.msra.mxu0 %v742
        %1080 = vmatprep.subr.mxu0 0.0
        %1081 = vmatpush2.msra.mxu0 0.0
        %1082 = vmatprep.subr.mxu0 0.0
        %1083 = vmatpush2.msra.mxu0 0.0
        %1084 = vmatprep.subr.mxu0 0.0
        %1085 = vmatpush2.msra.mxu0 0.0
        %1086 = vmatprep.subr.mxu0 0.0
        %1087 = vmatpush2.msra.mxu0 0.0
        %1088 = vmatprep.subr.mxu0 0.0
        %1089 = vmatpush2.msra.mxu0 0.0
        %1090 = vmatprep.subr.mxu0 0.0
        %1091 = vmatpush2.msra.mxu0 0.0
        %1092 = vmatprep.subr.mxu0 0.0
        %1093 = vmatpush2.msra.mxu0 0.0
        %1094 = vmatprep.subr.mxu0 0.0
        %1095 = vmatpush2.msra.mxu0 0.0
        %1096 = vmatprep.subr.mxu0 0.0
        %1097 = vmatpush2.msra.mxu0 0.0
        %1098 = vmatprep.subr.mxu0 0.0
        %1099 = vmatpush2.msra.mxu0 0.0
        %1100 = vmatprep.subr.mxu0 0.0
        %1101 = vmatpush2.msra.mxu0 0.0
        %1102 = vmatprep.subr.mxu0 0.0
        %1103 = vmatpush2.msra.mxu0 0.0
        %1104 = vmatprep.subr.mxu0 0.0
        %1105 = vmatpush2.msra.mxu0 0.0
        %1106 = vmatprep.subr.mxu0 0.0
        %1107 = vmatpush2.msra.mxu0 0.0
        %1108 = vmatprep.subr.mxu0 0.0
        %1109 = vmatpush2.msra.mxu0 0.0
        %1110 = vmatprep.subr.mxu0 0.0
        %1111 = vmatpush2.msra.mxu0 0.0
        %1112 = vmatprep.mubr.f32.mxu0 0.0
        %1113 = vmatmul.mubr.f32.gmra.mxu0 %v586
        %v1114 = vpop.f32.mrf.mxu0
        %v1115 = vadd.f32 %v970, %v1114
        %v1116 = vpop.f32.mrf.mxu0
        %1117 = vmatprep.mubr.f32.mxu0 0.0
        %1118 = vmatmul.mubr.f32.gmra.mxu0 %v591
        %v1119 = vpop.f32.mrf.mxu0
        %v1120 = vadd.f32 %v975, %v1119
        %v1121 = vpop.f32.mrf.mxu0
        %1122 = vmatprep.mubr.f32.mxu0 0.0
        %1123 = vmatmul.mubr.f32.gmra.mxu0 %v596
        %v1124 = vpop.f32.mrf.mxu0
        %v1125 = vadd.f32 %v980, %v1124
        %v1126 = vpop.f32.mrf.mxu0
        %1127 = vmatprep.mubr.f32.mxu0 0.0
        %1128 = vmatmul.mubr.f32.gmra.mxu0 %v601
        %v1129 = vpop.f32.mrf.mxu0
        %v1130 = vadd.f32 %v985, %v1129
        %v1131 = vpop.f32.mrf.mxu0
        %1132 = vmatprep.mubr.f32.mxu0 0.0
        %1133 = vmatmul.mubr.f32.gmra.mxu0 %v606
        %v1134 = vpop.f32.mrf.mxu0
        %v1135 = vadd.f32 %v990, %v1134
        %v1136 = vpop.f32.mrf.mxu0
        %1137 = vmatprep.mubr.f32.mxu0 0.0
        %1138 = vmatmul.mubr.f32.gmra.mxu0 %v611
        %v1139 = vpop.f32.mrf.mxu0
        %v1140 = vadd.f32 %v995, %v1139
        %v1141 = vpop.f32.mrf.mxu0
        %1142 = vmatprep.mubr.f32.mxu0 0.0
        %1143 = vmatmul.mubr.f32.gmra.mxu0 %v616
        %v1144 = vpop.f32.mrf.mxu0
        %v1145 = vadd.f32 %v1000, %v1144
        %v1146 = vpop.f32.mrf.mxu0
        %1147 = vmatprep.mubr.f32.mxu0 0.0
        %1148 = vmatmul.mubr.f32.gmra.mxu0 %v621
        %v1149 = vpop.f32.mrf.mxu0
        %v1150 = vadd.f32 %v1005, %v1149
        %v1151 = vpop.f32.mrf.mxu0
        %1152 = vmatprep.mubr.f32.mxu0 0.0
        %1153 = vmatmul.mubr.f32.gmra.mxu0 %v626
        %v1154 = vpop.f32.mrf.mxu0
        %v1155 = vadd.f32 %v1010, %v1154
        %v1156 = vpop.f32.mrf.mxu0
        %1157 = vmatprep.mubr.f32.mxu0 0.0
        %1158 = vmatmul.mubr.f32.gmra.mxu0 %v631
        %v1159 = vpop.f32.mrf.mxu0
        %v1160 = vadd.f32 %v1015, %v1159
        %v1161 = vpop.f32.mrf.mxu0
        %1162 = vmatprep.mubr.f32.mxu0 0.0
        %1163 = vmatmul.mubr.f32.gmra.mxu0 %v636
        %v1164 = vpop.f32.mrf.mxu0
        %v1165 = vadd.f32 %v1020, %v1164
        %v1166 = vpop.f32.mrf.mxu0
        %1167 = vmatprep.mubr.f32.mxu0 0.0
        %1168 = vmatmul.mubr.f32.gmra.mxu0 %v641
        %v1169 = vpop.f32.mrf.mxu0
        %v1170 = vadd.f32 %v1025, %v1169
        %v1171 = vpop.f32.mrf.mxu0
        %1172 = vmatprep.mubr.f32.mxu0 0.0
        %1173 = vmatmul.mubr.f32.gmra.mxu0 %v646
        %v1174 = vpop.f32.mrf.mxu0
        %v1175 = vadd.f32 %v1030, %v1174
        %v1176 = vpop.f32.mrf.mxu0
        %1177 = vmatprep.mubr.f32.mxu0 0.0
        %1178 = vmatmul.mubr.f32.gmra.mxu0 %v651
        %v1179 = vpop.f32.mrf.mxu0
        %v1180 = vadd.f32 %v1035, %v1179
        %v1181 = vpop.f32.mrf.mxu0
        %1182 = vmatprep.mubr.f32.mxu0 0.0
        %1183 = vmatmul.mubr.f32.gmra.mxu0 %v656
        %v1184 = vpop.f32.mrf.mxu0
        %v1185 = vadd.f32 %v1040, %v1184
        %v1186 = vpop.f32.mrf.mxu0
        %1187 = vmatprep.mubr.f32.mxu0 0.0
        %1188 = vmatmul.mubr.f32.gmra.mxu0 %v661
        %v1189 = vpop.f32.mrf.mxu0
        %v1190 = vadd.f32 %v1045, %v1189
        %v1191 = vpop.f32.mrf.mxu0
        %1192 = vdwg.mxu0
        %v1193 = vadd.f32 %v662, %v1115
        %v1194 = vadd.f32 %v663, %v1120
        %v1195 = vadd.f32 %v664, %v1125
        %v1196 = vadd.f32 %v665, %v1130
        %v1197 = vadd.f32 %v666, %v1135
        %v1198 = vadd.f32 %v667, %v1140
        %v1199 = vadd.f32 %v668, %v1145
        %v1200 = vadd.f32 %v669, %v1150
        %v1201 = vadd.f32 %v670, %v1155
        %v1202 = vadd.f32 %v671, %v1160
        %v1203 = vadd.f32 %v672, %v1165
        %v1204 = vadd.f32 %v673, %v1170
        %v1205 = vadd.f32 %v674, %v1175
        %v1206 = vadd.f32 %v675, %v1180
        %v1207 = vadd.f32 %v676, %v1185
        %v1208 = vadd.f32 %v677, %v1190
        %1209 = vst [vmem:[#allocation2] sm:$0xff] %v1193
        %1210 = vst [vmem:[#allocation2 + $0x8] sm:$0xff] %v1194
        %1211 = vst [vmem:[#allocation2 + $0x10] sm:$0xff] %v1195
        %1212 = vst [vmem:[#allocation2 + $0x18] sm:$0xff] %v1196
        %1213 = vst [vmem:[#allocation2 + $0x20] sm:$0xff] %v1197
        %1214 = vst [vmem:[#allocation2 + $0x28] sm:$0xff] %v1198
        %1215 = vst [vmem:[#allocation2 + $0x30] sm:$0xff] %v1199
        %1216 = vst [vmem:[#allocation2 + $0x38] sm:$0xff] %v1200
        %1217 = vst [vmem:[#allocation2 + $0x40] sm:$0xff] %v1201
        %1218 = vst [vmem:[#allocation2 + $0x48] sm:$0xff] %v1202
        %1219 = vst [vmem:[#allocation2 + $0x50] sm:$0xff] %v1203
        %1220 = vst [vmem:[#allocation2 + $0x58] sm:$0xff] %v1204
        %1221 = vst [vmem:[#allocation2 + $0x60] sm:$0xff] %v1205
        %1222 = vst [vmem:[#allocation2 + $0x68] sm:$0xff] %v1206
        %1223 = vst [vmem:[#allocation2 + $0x70] sm:$0xff] %v1207
        %1224 = vst [vmem:[#allocation2 + $0x78] sm:$0xff] %v1208
        %v1225 = vld [vmem:[#allocation3] sm:$0xff]
        %v1226 = vld [vmem:[#allocation3 + $0x8] sm:$0xff]
        %v1227 = vld [vmem:[#allocation3 + $0x10] sm:$0xff]
        %v1228 = vld [vmem:[#allocation3 + $0x18] sm:$0xff]
        %v1229 = vld [vmem:[#allocation3 + $0x20] sm:$0xff]
        %v1230 = vld [vmem:[#allocation3 + $0x28] sm:$0xff]
        %v1231 = vld [vmem:[#allocation3 + $0x30] sm:$0xff]
        %v1232 = vld [vmem:[#allocation3 + $0x38] sm:$0xff]
        %v1233 = vld [vmem:[#allocation3 + $0x40] sm:$0xff]
        %v1234 = vld [vmem:[#allocation3 + $0x48] sm:$0xff]
        %v1235 = vld [vmem:[#allocation3 + $0x50] sm:$0xff]
        %v1236 = vld [vmem:[#allocation3 + $0x58] sm:$0xff]
        %v1237 = vld [vmem:[#allocation3 + $0x60] sm:$0xff]
        %v1238 = vld [vmem:[#allocation3 + $0x68] sm:$0xff]
        %v1239 = vld [vmem:[#allocation3 + $0x70] sm:$0xff]
        %v1240 = vld [vmem:[#allocation3 + $0x78] sm:$0xff]
        %v1241 = vadd.f32 %v582, %v583
        %v1242 = vadd.f32 %v1241, %v584
        %v1243 = vadd.f32 %v1242, %v585
        %v1244 = vadd.f32 %v1243, %v586
        %1245 = vadd.xlane.f32.xlu0 %v1244
        %v1246 = vpop.xlane.xlu0 %1245
        %v1247 = vadd.f32 %v587, %v588
        %v1248 = vadd.f32 %v1247, %v589
        %v1249 = vadd.f32 %v1248, %v590
        %v1250 = vadd.f32 %v1249, %v591
        %1251 = vadd.xlane.f32.xlu0 %v1250
        %v1252 = vpop.xlane.xlu0 %1251
        %v1253 = vadd.f32 %v592, %v593
        %v1254 = vadd.f32 %v1253, %v594
        %v1255 = vadd.f32 %v1254, %v595
        %v1256 = vadd.f32 %v1255, %v596
        %1257 = vadd.xlane.f32.xlu0 %v1256
        %v1258 = vpop.xlane.xlu0 %1257
        %v1259 = vadd.f32 %v597, %v598
        %v1260 = vadd.f32 %v1259, %v599
        %v1261 = vadd.f32 %v1260, %v600
        %v1262 = vadd.f32 %v1261, %v601
        %1263 = vadd.xlane.f32.xlu0 %v1262
        %v1264 = vpop.xlane.xlu0 %1263
        %v1265 = vadd.f32 %v602, %v603
        %v1266 = vadd.f32 %v1265, %v604
        %v1267 = vadd.f32 %v1266, %v605
        %v1268 = vadd.f32 %v1267, %v606
        %1269 = vadd.xlane.f32.xlu0 %v1268
        %v1270 = vpop.xlane.xlu0 %1269
        %v1271 = vadd.f32 %v607, %v608
        %v1272 = vadd.f32 %v1271, %v609
        %v1273 = vadd.f32 %v1272, %v610
        %v1274 = vadd.f32 %v1273, %v611
        %1275 = vadd.xlane.f32.xlu0 %v1274
        %v1276 = vpop.xlane.xlu0 %1275
        %v1277 = vadd.f32 %v612, %v613
        %v1278 = vadd.f32 %v1277, %v614
        %v1279 = vadd.f32 %v1278, %v615
        %v1280 = vadd.f32 %v1279, %v616
        %1281 = vadd.xlane.f32.xlu0 %v1280
        %v1282 = vpop.xlane.xlu0 %1281
        %v1283 = vadd.f32 %v617, %v618
        %v1284 = vadd.f32 %v1283, %v619
        %v1285 = vadd.f32 %v1284, %v620
        %v1286 = vadd.f32 %v1285, %v621
        %1287 = vadd.xlane.f32.xlu0 %v1286
        %v1288 = vpop.xlane.xlu0 %1287
        %v1289 = vadd.f32 %v622, %v623
        %v1290 = vadd.f32 %v1289, %v624
        %v1291 = vadd.f32 %v1290, %v625
        %v1292 = vadd.f32 %v1291, %v626
        %1293 = vadd.xlane.f32.xlu0 %v1292
        %v1294 = vpop.xlane.xlu0 %1293
        %v1295 = vadd.f32 %v627, %v628
        %v1296 = vadd.f32 %v1295, %v629
        %v1297 = vadd.f32 %v1296, %v630
        %v1298 = vadd.f32 %v1297, %v631
        %1299 = vadd.xlane.f32.xlu0 %v1298
        %v1300 = vpop.xlane.xlu0 %1299
        %v1301 = vadd.f32 %v632, %v633
        %v1302 = vadd.f32 %v1301, %v634
        %v1303 = vadd.f32 %v1302, %v635
        %v1304 = vadd.f32 %v1303, %v636
        %1305 = vadd.xlane.f32.xlu0 %v1304
        %v1306 = vpop.xlane.xlu0 %1305
        %v1307 = vadd.f32 %v637, %v638
        %v1308 = vadd.f32 %v1307, %v639
        %v1309 = vadd.f32 %v1308, %v640
        %v1310 = vadd.f32 %v1309, %v641
        %1311 = vadd.xlane.f32.xlu0 %v1310
        %v1312 = vpop.xlane.xlu0 %1311
        %v1313 = vadd.f32 %v642, %v643
        %v1314 = vadd.f32 %v1313, %v644
        %v1315 = vadd.f32 %v1314, %v645
        %v1316 = vadd.f32 %v1315, %v646
        %1317 = vadd.xlane.f32.xlu0 %v1316
        %v1318 = vpop.xlane.xlu0 %1317
        %v1319 = vadd.f32 %v647, %v648
        %v1320 = vadd.f32 %v1319, %v649
        %v1321 = vadd.f32 %v1320, %v650
        %v1322 = vadd.f32 %v1321, %v651
        %1323 = vadd.xlane.f32.xlu0 %v1322
        %v1324 = vpop.xlane.xlu0 %1323
        %v1325 = vadd.f32 %v652, %v653
        %v1326 = vadd.f32 %v1325, %v654
        %v1327 = vadd.f32 %v1326, %v655
        %v1328 = vadd.f32 %v1327, %v656
        %1329 = vadd.xlane.f32.xlu0 %v1328
        %v1330 = vpop.xlane.xlu0 %1329
        %v1331 = vadd.f32 %v657, %v658
        %v1332 = vadd.f32 %v1331, %v659
        %v1333 = vadd.f32 %v1332, %v660
        %v1334 = vadd.f32 %v1333, %v661
        %1335 = vadd.xlane.f32.xlu0 %v1334
        %v1336 = vpop.xlane.xlu0 %1335
        %v1337 = vadd.f32 %v1225, %v1246
        %v1338 = vadd.f32 %v1226, %v1252
        %v1339 = vadd.f32 %v1227, %v1258
        %v1340 = vadd.f32 %v1228, %v1264
        %v1341 = vadd.f32 %v1229, %v1270
        %v1342 = vadd.f32 %v1230, %v1276
        %v1343 = vadd.f32 %v1231, %v1282
        %v1344 = vadd.f32 %v1232, %v1288
        %v1345 = vadd.f32 %v1233, %v1294
        %v1346 = vadd.f32 %v1234, %v1300
        %v1347 = vadd.f32 %v1235, %v1306
        %v1348 = vadd.f32 %v1236, %v1312
        %v1349 = vadd.f32 %v1237, %v1318
        %v1350 = vadd.f32 %v1238, %v1324
        %v1351 = vadd.f32 %v1239, %v1330
        %v1352 = vadd.f32 %v1240, %v1336
        %vm1353 = vcmask 7168
        %1354 = vst.msk [vmem:[#allocation3] sm:$0xff] %vm1353, %v1337
        %1355 = vst.msk [vmem:[#allocation3 + $0x8] sm:$0xff] %vm1353, %v1338
        %1356 = vst.msk [vmem:[#allocation3 + $0x10] sm:$0xff] %vm1353, %v1339
        %1357 = vst.msk [vmem:[#allocation3 + $0x18] sm:$0xff] %vm1353, %v1340
        %1358 = vst.msk [vmem:[#allocation3 + $0x20] sm:$0xff] %vm1353, %v1341
        %1359 = vst.msk [vmem:[#allocation3 + $0x28] sm:$0xff] %vm1353, %v1342
        %1360 = vst.msk [vmem:[#allocation3 + $0x30] sm:$0xff] %vm1353, %v1343
        %1361 = vst.msk [vmem:[#allocation3 + $0x38] sm:$0xff] %vm1353, %v1344
        %1362 = vst.msk [vmem:[#allocation3 + $0x40] sm:$0xff] %vm1353, %v1345
        %1363 = vst.msk [vmem:[#allocation3 + $0x48] sm:$0xff] %vm1353, %v1346
        %1364 = vst.msk [vmem:[#allocation3 + $0x50] sm:$0xff] %vm1353, %v1347
        %1365 = vst.msk [vmem:[#allocation3 + $0x58] sm:$0xff] %vm1353, %v1348
        %1366 = vst.msk [vmem:[#allocation3 + $0x60] sm:$0xff] %vm1353, %v1349
        %1367 = vst.msk [vmem:[#allocation3 + $0x68] sm:$0xff] %vm1353, %v1350
        %1368 = vst.msk [vmem:[#allocation3 + $0x70] sm:$0xff] %vm1353, %v1351
        %1369 = vst.msk [vmem:[#allocation3 + $0x78] sm:$0xff] %vm1353, %v1352
        // Predicated region
        $region65: #{tpu_custom_call.1} parent=39 // pred_check
          %p1370 = pneg %p329
        $region66: #{tpu_custom_call.1} parent=39 // pred_check_branch
          %1372 = sbr.rel (%p1370) target = $region68
        $region67: #{tpu_custom_call.1} parent=39 // pred_region
          %v1373 = vld [vmem:[%s290] sm:$0xff]
          %v1374 = vld [vmem:[%s290 + $0x8] sm:$0xff]
          %v1375 = vld [vmem:[%s290 + $0x10] sm:$0xff]
          %v1376 = vld [vmem:[%s290 + $0x18] sm:$0xff]
          %v1377 = vld [vmem:[%s290 + $0x20] sm:$0xff]
          %v1378 = vld [vmem:[%s290 + $0x28] sm:$0xff]
          %v1379 = vld [vmem:[%s290 + $0x30] sm:$0xff]
          %v1380 = vld [vmem:[%s290 + $0x38] sm:$0xff]
          %v1381 = vld [vmem:[%s290 + $0x40] sm:$0xff]
          %v1382 = vld [vmem:[%s290 + $0x48] sm:$0xff]
          %v1383 = vld [vmem:[%s290 + $0x50] sm:$0xff]
          %v1384 = vld [vmem:[%s290 + $0x58] sm:$0xff]
          %v1385 = vld [vmem:[%s290 + $0x60] sm:$0xff]
          %v1386 = vld [vmem:[%s290 + $0x68] sm:$0xff]
          %v1387 = vld [vmem:[%s290 + $0x70] sm:$0xff]
          %v1388 = vld [vmem:[%s290 + $0x78] sm:$0xff]
          %v1389 = vld [vmem:[#allocation10] sm:$0xff]
          %v1390 = vld [vmem:[#allocation10 + $0x8] sm:$0xff]
          %v1391 = vld [vmem:[#allocation10 + $0x10] sm:$0xff]
          %v1392 = vld [vmem:[#allocation10 + $0x18] sm:$0xff]
          %v1393 = vld [vmem:[#allocation10 + $0x20] sm:$0xff]
          %v1394 = vld [vmem:[#allocation10 + $0x28] sm:$0xff]
          %v1395 = vld [vmem:[#allocation10 + $0x30] sm:$0xff]
          %v1396 = vld [vmem:[#allocation10 + $0x38] sm:$0xff]
          %v1397 = vld [vmem:[#allocation10 + $0x40] sm:$0xff]
          %v1398 = vld [vmem:[#allocation10 + $0x48] sm:$0xff]
          %v1399 = vld [vmem:[#allocation10 + $0x50] sm:$0xff]
          %v1400 = vld [vmem:[#allocation10 + $0x58] sm:$0xff]
          %v1401 = vld [vmem:[#allocation10 + $0x60] sm:$0xff]
          %v1402 = vld [vmem:[#allocation10 + $0x68] sm:$0xff]
          %v1403 = vld [vmem:[#allocation10 + $0x70] sm:$0xff]
          %v1404 = vld [vmem:[#allocation10 + $0x78] sm:$0xff]
          %v1405 = vld [vmem:[#allocation3] sm:$0xff]
          %v1406 = vld [vmem:[#allocation3 + $0x8] sm:$0xff]
          %v1407 = vld [vmem:[#allocation3 + $0x10] sm:$0xff]
          %v1408 = vld [vmem:[#allocation3 + $0x18] sm:$0xff]
          %v1409 = vld [vmem:[#allocation3 + $0x20] sm:$0xff]
          %v1410 = vld [vmem:[#allocation3 + $0x28] sm:$0xff]
          %v1411 = vld [vmem:[#allocation3 + $0x30] sm:$0xff]
          %v1412 = vld [vmem:[#allocation3 + $0x38] sm:$0xff]
          %v1413 = vld [vmem:[#allocation3 + $0x40] sm:$0xff]
          %v1414 = vld [vmem:[#allocation3 + $0x48] sm:$0xff]
          %v1415 = vld [vmem:[#allocation3 + $0x50] sm:$0xff]
          %v1416 = vld [vmem:[#allocation3 + $0x58] sm:$0xff]
          %v1417 = vld [vmem:[#allocation3 + $0x60] sm:$0xff]
          %v1418 = vld [vmem:[#allocation3 + $0x68] sm:$0xff]
          %v1419 = vld [vmem:[#allocation3 + $0x70] sm:$0xff]
          %v1420 = vld [vmem:[#allocation3 + $0x78] sm:$0xff]
          %v1421 = vmax.f32 %v1405, 1.0
          %v1422 = vmax.f32 %v1406, 1.0
          %v1423 = vmax.f32 %v1407, 1.0
          %v1424 = vmax.f32 %v1408, 1.0
          %v1425 = vmax.f32 %v1409, 1.0
          %v1426 = vmax.f32 %v1410, 1.0
          %v1427 = vmax.f32 %v1411, 1.0
          %v1428 = vmax.f32 %v1412, 1.0
          %v1429 = vmax.f32 %v1413, 1.0
          %v1430 = vmax.f32 %v1414, 1.0
          %v1431 = vmax.f32 %v1415, 1.0
          %v1432 = vmax.f32 %v1416, 1.0
          %v1433 = vmax.f32 %v1417, 1.0
          %v1434 = vmax.f32 %v1418, 1.0
          %v1435 = vmax.f32 %v1419, 1.0
          %v1436 = vmax.f32 %v1420, 1.0
          %v1437 = vrcp.pop %v1421
          %v1438 = vrcp.pop %v1422
          %v1439 = vrcp.pop %v1423
          %v1440 = vrcp.pop %v1424
          %v1441 = vrcp.pop %v1425
          %v1442 = vrcp.pop %v1426
          %v1443 = vrcp.pop %v1427
          %v1444 = vrcp.pop %v1428
          %v1445 = vrcp.pop %v1429
          %v1446 = vrcp.pop %v1430
          %v1447 = vrcp.pop %v1431
          %v1448 = vrcp.pop %v1432
          %v1449 = vrcp.pop %v1433
          %v1450 = vrcp.pop %v1434
          %v1451 = vrcp.pop %v1435
          %v1452 = vrcp.pop %v1436
          %v1453 = vmul.f32 %v1421, %v1437
          %v1454 = vmul.f32 %v1422, %v1438
          %v1455 = vmul.f32 %v1423, %v1439
          %v1456 = vmul.f32 %v1424, %v1440
          %v1457 = vmul.f32 %v1425, %v1441
          %v1458 = vmul.f32 %v1426, %v1442
          %v1459 = vmul.f32 %v1427, %v1443
          %v1460 = vmul.f32 %v1428, %v1444
          %v1461 = vmul.f32 %v1429, %v1445
          %v1462 = vmul.f32 %v1430, %v1446
          %v1463 = vmul.f32 %v1431, %v1447
          %v1464 = vmul.f32 %v1432, %v1448
          %v1465 = vmul.f32 %v1433, %v1449
          %v1466 = vmul.f32 %v1434, %v1450
          %v1467 = vmul.f32 %v1435, %v1451
          %v1468 = vmul.f32 %v1436, %v1452
          %v1469 = vsub.f32 2.0, %v1453
          %v1470 = vsub.f32 2.0, %v1454
          %v1471 = vsub.f32 2.0, %v1455
          %v1472 = vsub.f32 2.0, %v1456
          %v1473 = vsub.f32 2.0, %v1457
          %v1474 = vsub.f32 2.0, %v1458
          %v1475 = vsub.f32 2.0, %v1459
          %v1476 = vsub.f32 2.0, %v1460
          %v1477 = vsub.f32 2.0, %v1461
          %v1478 = vsub.f32 2.0, %v1462
          %v1479 = vsub.f32 2.0, %v1463
          %v1480 = vsub.f32 2.0, %v1464
          %v1481 = vsub.f32 2.0, %v1465
          %v1482 = vsub.f32 2.0, %v1466
          %v1483 = vsub.f32 2.0, %v1467
          %v1484 = vsub.f32 2.0, %v1468
          %v1485 = vmul.f32 %v1437, %v1469
          %v1486 = vmul.f32 %v1438, %v1470
          %v1487 = vmul.f32 %v1439, %v1471
          %v1488 = vmul.f32 %v1440, %v1472
          %v1489 = vmul.f32 %v1441, %v1473
          %v1490 = vmul.f32 %v1442, %v1474
          %v1491 = vmul.f32 %v1443, %v1475
          %v1492 = vmul.f32 %v1444, %v1476
          %v1493 = vmul.f32 %v1445, %v1477
          %v1494 = vmul.f32 %v1446, %v1478
          %v1495 = vmul.f32 %v1447, %v1479
          %v1496 = vmul.f32 %v1448, %v1480
          %v1497 = vmul.f32 %v1449, %v1481
          %v1498 = vmul.f32 %v1450, %v1482
          %v1499 = vmul.f32 %v1451, %v1483
          %v1500 = vmul.f32 %v1452, %v1484
          %v1501 = vld [vmem:[#allocation2] sm:$0xff]
          %v1502 = vld [vmem:[#allocation2 + $0x8] sm:$0xff]
          %v1503 = vld [vmem:[#allocation2 + $0x10] sm:$0xff]
          %v1504 = vld [vmem:[#allocation2 + $0x18] sm:$0xff]
          %v1505 = vld [vmem:[#allocation2 + $0x20] sm:$0xff]
          %v1506 = vld [vmem:[#allocation2 + $0x28] sm:$0xff]
          %v1507 = vld [vmem:[#allocation2 + $0x30] sm:$0xff]
          %v1508 = vld [vmem:[#allocation2 + $0x38] sm:$0xff]
          %v1509 = vld [vmem:[#allocation2 + $0x40] sm:$0xff]
          %v1510 = vld [vmem:[#allocation2 + $0x48] sm:$0xff]
          %v1511 = vld [vmem:[#allocation2 + $0x50] sm:$0xff]
          %v1512 = vld [vmem:[#allocation2 + $0x58] sm:$0xff]
          %v1513 = vld [vmem:[#allocation2 + $0x60] sm:$0xff]
          %v1514 = vld [vmem:[#allocation2 + $0x68] sm:$0xff]
          %v1515 = vld [vmem:[#allocation2 + $0x70] sm:$0xff]
          %v1516 = vld [vmem:[#allocation2 + $0x78] sm:$0xff]
          %1518 = vset.pattern.permute.xlu0 0
          %1519 = vperm.xlu0 %1518, %v1485
          %v1520 = vpop.permute.xlu0 %1519
          %1523 = vset.pattern.permute.xlu0 0
          %1524 = vperm.xlu0 %1523, %v1486
          %v1525 = vpop.permute.xlu0 %1524
          %1528 = vset.pattern.permute.xlu0 0
          %1529 = vperm.xlu0 %1528, %v1487
          %v1530 = vpop.permute.xlu0 %1529
          %1533 = vset.pattern.permute.xlu0 0
          %1534 = vperm.xlu0 %1533, %v1488
          %v1535 = vpop.permute.xlu0 %1534
          %1538 = vset.pattern.permute.xlu0 0
          %1539 = vperm.xlu0 %1538, %v1489
          %v1540 = vpop.permute.xlu0 %1539
          %1543 = vset.pattern.permute.xlu0 0
          %1544 = vperm.xlu0 %1543, %v1490
          %v1545 = vpop.permute.xlu0 %1544
          %1548 = vset.pattern.permute.xlu0 0
          %1549 = vperm.xlu0 %1548, %v1491
          %v1550 = vpop.permute.xlu0 %1549
          %1553 = vset.pattern.permute.xlu0 0
          %1554 = vperm.xlu0 %1553, %v1492
          %v1555 = vpop.permute.xlu0 %1554
          %1558 = vset.pattern.permute.xlu0 0
          %1559 = vperm.xlu0 %1558, %v1493
          %v1560 = vpop.permute.xlu0 %1559
          %1563 = vset.pattern.permute.xlu0 0
          %1564 = vperm.xlu0 %1563, %v1494
          %v1565 = vpop.permute.xlu0 %1564
          %1568 = vset.pattern.permute.xlu0 0
          %1569 = vperm.xlu0 %1568, %v1495
          %v1570 = vpop.permute.xlu0 %1569
          %1573 = vset.pattern.permute.xlu0 0
          %1574 = vperm.xlu0 %1573, %v1496
          %v1575 = vpop.permute.xlu0 %1574
          %1578 = vset.pattern.permute.xlu0 0
          %1579 = vperm.xlu0 %1578, %v1497
          %v1580 = vpop.permute.xlu0 %1579
          %1583 = vset.pattern.permute.xlu0 0
          %1584 = vperm.xlu0 %1583, %v1498
          %v1585 = vpop.permute.xlu0 %1584
          %1588 = vset.pattern.permute.xlu0 0
          %1589 = vperm.xlu0 %1588, %v1499
          %v1590 = vpop.permute.xlu0 %1589
          %1593 = vset.pattern.permute.xlu0 0
          %1594 = vperm.xlu0 %1593, %v1500
          %v1595 = vpop.permute.xlu0 %1594
          %v1597 = vmul.f32 %v1501, %v1520
          %v1598 = vmul.f32 %v1502, %v1525
          %v1599 = vmul.f32 %v1503, %v1530
          %v1600 = vmul.f32 %v1504, %v1535
          %v1601 = vmul.f32 %v1505, %v1540
          %v1602 = vmul.f32 %v1506, %v1545
          %v1603 = vmul.f32 %v1507, %v1550
          %v1604 = vmul.f32 %v1508, %v1555
          %v1605 = vmul.f32 %v1509, %v1560
          %v1606 = vmul.f32 %v1510, %v1565
          %v1607 = vmul.f32 %v1511, %v1570
          %v1608 = vmul.f32 %v1512, %v1575
          %v1609 = vmul.f32 %v1513, %v1580
          %v1610 = vmul.f32 %v1514, %v1585
          %v1611 = vmul.f32 %v1515, %v1590
          %v1612 = vmul.f32 %v1516, %v1595
          %v1613 = vld [vmem:[#allocation11] sm:$0xff]
          %v1614 = vld [vmem:[#allocation11 + $0x8] sm:$0xff]
          %v1615 = vld [vmem:[#allocation11 + $0x10] sm:$0xff]
          %v1616 = vld [vmem:[#allocation11 + $0x18] sm:$0xff]
          %v1617 = vld [vmem:[#allocation11 + $0x20] sm:$0xff]
          %v1618 = vld [vmem:[#allocation11 + $0x28] sm:$0xff]
          %v1619 = vld [vmem:[#allocation11 + $0x30] sm:$0xff]
          %v1620 = vld [vmem:[#allocation11 + $0x38] sm:$0xff]
          %v1621 = vld [vmem:[#allocation11 + $0x40] sm:$0xff]
          %v1622 = vld [vmem:[#allocation11 + $0x48] sm:$0xff]
          %v1623 = vld [vmem:[#allocation11 + $0x50] sm:$0xff]
          %v1624 = vld [vmem:[#allocation11 + $0x58] sm:$0xff]
          %v1625 = vld [vmem:[#allocation11 + $0x60] sm:$0xff]
          %v1626 = vld [vmem:[#allocation11 + $0x68] sm:$0xff]
          %v1627 = vld [vmem:[#allocation11 + $0x70] sm:$0xff]
          %v1628 = vld [vmem:[#allocation11 + $0x78] sm:$0xff]
          %1629 = vmatprep.subr.mxu0 0.0
          %1630 = vmatpush1.msra.mxu0 %v1628
          %1631 = vmatprep.subr.mxu0 0.0
          %1632 = vmatpush1.msra.mxu0 %v1627
          %1633 = vmatprep.subr.mxu0 0.0
          %1634 = vmatpush1.msra.mxu0 %v1626
          %1635 = vmatprep.subr.mxu0 0.0
          %1636 = vmatpush1.msra.mxu0 %v1625
          %1637 = vmatprep.subr.mxu0 0.0
          %1638 = vmatpush1.msra.mxu0 %v1624
          %1639 = vmatprep.subr.mxu0 0.0
          %1640 = vmatpush1.msra.mxu0 %v1623
          %1641 = vmatprep.subr.mxu0 0.0
          %1642 = vmatpush1.msra.mxu0 %v1622
          %1643 = vmatprep.subr.mxu0 0.0
          %1644 = vmatpush1.msra.mxu0 %v1621
          %1645 = vmatprep.subr.mxu0 0.0
          %1646 = vmatpush1.msra.mxu0 %v1620
          %1647 = vmatprep.subr.mxu0 0.0
          %1648 = vmatpush1.msra.mxu0 %v1619
          %1649 = vmatprep.subr.mxu0 0.0
          %1650 = vmatpush1.msra.mxu0 %v1618
          %1651 = vmatprep.subr.mxu0 0.0
          %1652 = vmatpush1.msra.mxu0 %v1617
          %1653 = vmatprep.subr.mxu0 0.0
          %1654 = vmatpush1.msra.mxu0 %v1616
          %1655 = vmatprep.subr.mxu0 0.0
          %1656 = vmatpush1.msra.mxu0 %v1615
          %1657 = vmatprep.subr.mxu0 0.0
          %1658 = vmatpush1.msra.mxu0 %v1614
          %1659 = vmatprep.subr.mxu0 0.0
          %1660 = vmatpush1.msra.mxu0 %v1613
          %1661 = vmatprep.subr.mxu0 0.0
          %1662 = vmatpush2.msra.mxu0 0.0
          %1663 = vmatprep.subr.mxu0 0.0
          %1664 = vmatpush2.msra.mxu0 0.0
          %1665 = vmatprep.subr.mxu0 0.0
          %1666 = vmatpush2.msra.mxu0 0.0
          %1667 = vmatprep.subr.mxu0 0.0
          %1668 = vmatpush2.msra.mxu0 0.0
          %1669 = vmatprep.subr.mxu0 0.0
          %1670 = vmatpush2.msra.mxu0 0.0
          %1671 = vmatprep.subr.mxu0 0.0
          %1672 = vmatpush2.msra.mxu0 0.0
          %1673 = vmatprep.subr.mxu0 0.0
          %1674 = vmatpush2.msra.mxu0 0.0
          %1675 = vmatprep.subr.mxu0 0.0
          %1676 = vmatpush2.msra.mxu0 0.0
          %1677 = vmatprep.subr.mxu0 0.0
          %1678 = vmatpush2.msra.mxu0 0.0
          %1679 = vmatprep.subr.mxu0 0.0
          %1680 = vmatpush2.msra.mxu0 0.0
          %1681 = vmatprep.subr.mxu0 0.0
          %1682 = vmatpush2.msra.mxu0 0.0
          %1683 = vmatprep.subr.mxu0 0.0
          %1684 = vmatpush2.msra.mxu0 0.0
          %1685 = vmatprep.subr.mxu0 0.0
          %1686 = vmatpush2.msra.mxu0 0.0
          %1687 = vmatprep.subr.mxu0 0.0
          %1688 = vmatpush2.msra.mxu0 0.0
          %1689 = vmatprep.subr.mxu0 0.0
          %1690 = vmatpush2.msra.mxu0 0.0
          %1691 = vmatprep.subr.mxu0 0.0
          %1692 = vmatpush2.msra.mxu0 0.0
          %1693 = vmatprep.mubr.f32.mxu0 0.0
          %1694 = vmatmul.mubr.f32.gmra.mxu0 %v1597
          %v1695 = vpop.f32.mrf.mxu0
          %v1696 = vadd.f32 0.0, %v1695
          %v1697 = vpop.f32.mrf.mxu0
          %1698 = vmatprep.mubr.f32.mxu0 0.0
          %1699 = vmatmul.mubr.f32.gmra.mxu0 %v1598
          %v1700 = vpop.f32.mrf.mxu0
          %v1701 = vadd.f32 0.0, %v1700
          %v1702 = vpop.f32.mrf.mxu0
          %1703 = vmatprep.mubr.f32.mxu0 0.0
          %1704 = vmatmul.mubr.f32.gmra.mxu0 %v1599
          %v1705 = vpop.f32.mrf.mxu0
          %v1706 = vadd.f32 0.0, %v1705
          %v1707 = vpop.f32.mrf.mxu0
          %1708 = vmatprep.mubr.f32.mxu0 0.0
          %1709 = vmatmul.mubr.f32.gmra.mxu0 %v1600
          %v1710 = vpop.f32.mrf.mxu0
          %v1711 = vadd.f32 0.0, %v1710
          %v1712 = vpop.f32.mrf.mxu0
          %1713 = vmatprep.mubr.f32.mxu0 0.0
          %1714 = vmatmul.mubr.f32.gmra.mxu0 %v1601
          %v1715 = vpop.f32.mrf.mxu0
          %v1716 = vadd.f32 0.0, %v1715
          %v1717 = vpop.f32.mrf.mxu0
          %1718 = vmatprep.mubr.f32.mxu0 0.0
          %1719 = vmatmul.mubr.f32.gmra.mxu0 %v1602
          %v1720 = vpop.f32.mrf.mxu0
          %v1721 = vadd.f32 0.0, %v1720
          %v1722 = vpop.f32.mrf.mxu0
          %1723 = vmatprep.mubr.f32.mxu0 0.0
          %1724 = vmatmul.mubr.f32.gmra.mxu0 %v1603
          %v1725 = vpop.f32.mrf.mxu0
          %v1726 = vadd.f32 0.0, %v1725
          %v1727 = vpop.f32.mrf.mxu0
          %1728 = vmatprep.mubr.f32.mxu0 0.0
          %1729 = vmatmul.mubr.f32.gmra.mxu0 %v1604
          %v1730 = vpop.f32.mrf.mxu0
          %v1731 = vadd.f32 0.0, %v1730
          %v1732 = vpop.f32.mrf.mxu0
          %1733 = vmatprep.mubr.f32.mxu0 0.0
          %1734 = vmatmul.mubr.f32.gmra.mxu0 %v1605
          %v1735 = vpop.f32.mrf.mxu0
          %v1736 = vadd.f32 0.0, %v1735
          %v1737 = vpop.f32.mrf.mxu0
          %1738 = vmatprep.mubr.f32.mxu0 0.0
          %1739 = vmatmul.mubr.f32.gmra.mxu0 %v1606
          %v1740 = vpop.f32.mrf.mxu0
          %v1741 = vadd.f32 0.0, %v1740
          %v1742 = vpop.f32.mrf.mxu0
          %1743 = vmatprep.mubr.f32.mxu0 0.0
          %1744 = vmatmul.mubr.f32.gmra.mxu0 %v1607
          %v1745 = vpop.f32.mrf.mxu0
          %v1746 = vadd.f32 0.0, %v1745
          %v1747 = vpop.f32.mrf.mxu0
          %1748 = vmatprep.mubr.f32.mxu0 0.0
          %1749 = vmatmul.mubr.f32.gmra.mxu0 %v1608
          %v1750 = vpop.f32.mrf.mxu0
          %v1751 = vadd.f32 0.0, %v1750
          %v1752 = vpop.f32.mrf.mxu0
          %1753 = vmatprep.mubr.f32.mxu0 0.0
          %1754 = vmatmul.mubr.f32.gmra.mxu0 %v1609
          %v1755 = vpop.f32.mrf.mxu0
          %v1756 = vadd.f32 0.0, %v1755
          %v1757 = vpop.f32.mrf.mxu0
          %1758 = vmatprep.mubr.f32.mxu0 0.0
          %1759 = vmatmul.mubr.f32.gmra.mxu0 %v1610
          %v1760 = vpop.f32.mrf.mxu0
          %v1761 = vadd.f32 0.0, %v1760
          %v1762 = vpop.f32.mrf.mxu0
          %1763 = vmatprep.mubr.f32.mxu0 0.0
          %1764 = vmatmul.mubr.f32.gmra.mxu0 %v1611
          %v1765 = vpop.f32.mrf.mxu0
          %v1766 = vadd.f32 0.0, %v1765
          %v1767 = vpop.f32.mrf.mxu0
          %1768 = vmatprep.mubr.f32.mxu0 0.0
          %1769 = vmatmul.mubr.f32.gmra.mxu0 %v1612
          %v1770 = vpop.f32.mrf.mxu0
          %v1771 = vadd.f32 0.0, %v1770
          %v1772 = vpop.f32.mrf.mxu0
          %1773 = vdwg.mxu0
          %1774 = vmatprep.subr.mxu0 0.0
          %1775 = vmatpush1.msra.mxu0 %v1404
          %1776 = vmatprep.subr.mxu0 0.0
          %1777 = vmatpush1.msra.mxu0 %v1403
          %1778 = vmatprep.subr.mxu0 0.0
          %1779 = vmatpush1.msra.mxu0 %v1402
          %1780 = vmatprep.subr.mxu0 0.0
          %1781 = vmatpush1.msra.mxu0 %v1401
          %1782 = vmatprep.subr.mxu0 0.0
          %1783 = vmatpush1.msra.mxu0 %v1400
          %1784 = vmatprep.subr.mxu0 0.0
          %1785 = vmatpush1.msra.mxu0 %v1399
          %1786 = vmatprep.subr.mxu0 0.0
          %1787 = vmatpush1.msra.mxu0 %v1398
          %1788 = vmatprep.subr.mxu0 0.0
          %1789 = vmatpush1.msra.mxu0 %v1397
          %1790 = vmatprep.subr.mxu0 0.0
          %1791 = vmatpush1.msra.mxu0 %v1396
          %1792 = vmatprep.subr.mxu0 0.0
          %1793 = vmatpush1.msra.mxu0 %v1395
          %1794 = vmatprep.subr.mxu0 0.0
          %1795 = vmatpush1.msra.mxu0 %v1394
          %1796 = vmatprep.subr.mxu0 0.0
          %1797 = vmatpush1.msra.mxu0 %v1393
          %1798 = vmatprep.subr.mxu0 0.0
          %1799 = vmatpush1.msra.mxu0 %v1392
          %1800 = vmatprep.subr.mxu0 0.0
          %1801 = vmatpush1.msra.mxu0 %v1391
          %1802 = vmatprep.subr.mxu0 0.0
          %1803 = vmatpush1.msra.mxu0 %v1390
          %1804 = vmatprep.subr.mxu0 0.0
          %1805 = vmatpush1.msra.mxu0 %v1389
          %1806 = vmatprep.subr.mxu0 0.0
          %1807 = vmatpush2.msra.mxu0 0.0
          %1808 = vmatprep.subr.mxu0 0.0
          %1809 = vmatpush2.msra.mxu0 0.0
          %1810 = vmatprep.subr.mxu0 0.0
          %1811 = vmatpush2.msra.mxu0 0.0
          %1812 = vmatprep.subr.mxu0 0.0
          %1813 = vmatpush2.msra.mxu0 0.0
          %1814 = vmatprep.subr.mxu0 0.0
          %1815 = vmatpush2.msra.mxu0 0.0
          %1816 = vmatprep.subr.mxu0 0.0
          %1817 = vmatpush2.msra.mxu0 0.0
          %1818 = vmatprep.subr.mxu0 0.0
          %1819 = vmatpush2.msra.mxu0 0.0
          %1820 = vmatprep.subr.mxu0 0.0
          %1821 = vmatpush2.msra.mxu0 0.0
          %1822 = vmatprep.subr.mxu0 0.0
          %1823 = vmatpush2.msra.mxu0 0.0
          %1824 = vmatprep.subr.mxu0 0.0
          %1825 = vmatpush2.msra.mxu0 0.0
          %1826 = vmatprep.subr.mxu0 0.0
          %1827 = vmatpush2.msra.mxu0 0.0
          %1828 = vmatprep.subr.mxu0 0.0
          %1829 = vmatpush2.msra.mxu0 0.0
          %1830 = vmatprep.subr.mxu0 0.0
          %1831 = vmatpush2.msra.mxu0 0.0
          %1832 = vmatprep.subr.mxu0 0.0
          %1833 = vmatpush2.msra.mxu0 0.0
          %1834 = vmatprep.subr.mxu0 0.0
          %1835 = vmatpush2.msra.mxu0 0.0
          %1836 = vmatprep.subr.mxu0 0.0
          %1837 = vmatpush2.msra.mxu0 0.0
          %1838 = vmatprep.mubr.f32.mxu0 0.0
          %1839 = vmatmul.mubr.f32.gmra.mxu0 %v1373
          %v1840 = vpop.f32.mrf.mxu0
          %v1841 = vadd.f32 %v1696, %v1840
          %v1842 = vpop.f32.mrf.mxu0
          %1843 = vmatprep.mubr.f32.mxu0 0.0
          %1844 = vmatmul.mubr.f32.gmra.mxu0 %v1374
          %v1845 = vpop.f32.mrf.mxu0
          %v1846 = vadd.f32 %v1701, %v1845
          %v1847 = vpop.f32.mrf.mxu0
          %1848 = vmatprep.mubr.f32.mxu0 0.0
          %1849 = vmatmul.mubr.f32.gmra.mxu0 %v1375
          %v1850 = vpop.f32.mrf.mxu0
          %v1851 = vadd.f32 %v1706, %v1850
          %v1852 = vpop.f32.mrf.mxu0
          %1853 = vmatprep.mubr.f32.mxu0 0.0
          %1854 = vmatmul.mubr.f32.gmra.mxu0 %v1376
          %v1855 = vpop.f32.mrf.mxu0
          %v1856 = vadd.f32 %v1711, %v1855
          %v1857 = vpop.f32.mrf.mxu0
          %1858 = vmatprep.mubr.f32.mxu0 0.0
          %1859 = vmatmul.mubr.f32.gmra.mxu0 %v1377
          %v1860 = vpop.f32.mrf.mxu0
          %v1861 = vadd.f32 %v1716, %v1860
          %v1862 = vpop.f32.mrf.mxu0
          %1863 = vmatprep.mubr.f32.mxu0 0.0
          %1864 = vmatmul.mubr.f32.gmra.mxu0 %v1378
          %v1865 = vpop.f32.mrf.mxu0
          %v1866 = vadd.f32 %v1721, %v1865
          %v1867 = vpop.f32.mrf.mxu0
          %1868 = vmatprep.mubr.f32.mxu0 0.0
          %1869 = vmatmul.mubr.f32.gmra.mxu0 %v1379
          %v1870 = vpop.f32.mrf.mxu0
          %v1871 = vadd.f32 %v1726, %v1870
          %v1872 = vpop.f32.mrf.mxu0
          %1873 = vmatprep.mubr.f32.mxu0 0.0
          %1874 = vmatmul.mubr.f32.gmra.mxu0 %v1380
          %v1875 = vpop.f32.mrf.mxu0
          %v1876 = vadd.f32 %v1731, %v1875
          %v1877 = vpop.f32.mrf.mxu0
          %1878 = vmatprep.mubr.f32.mxu0 0.0
          %1879 = vmatmul.mubr.f32.gmra.mxu0 %v1381
          %v1880 = vpop.f32.mrf.mxu0
          %v1881 = vadd.f32 %v1736, %v1880
          %v1882 = vpop.f32.mrf.mxu0
          %1883 = vmatprep.mubr.f32.mxu0 0.0
          %1884 = vmatmul.mubr.f32.gmra.mxu0 %v1382
          %v1885 = vpop.f32.mrf.mxu0
          %v1886 = vadd.f32 %v1741, %v1885
          %v1887 = vpop.f32.mrf.mxu0
          %1888 = vmatprep.mubr.f32.mxu0 0.0
          %1889 = vmatmul.mubr.f32.gmra.mxu0 %v1383
          %v1890 = vpop.f32.mrf.mxu0
          %v1891 = vadd.f32 %v1746, %v1890
          %v1892 = vpop.f32.mrf.mxu0
          %1893 = vmatprep.mubr.f32.mxu0 0.0
          %1894 = vmatmul.mubr.f32.gmra.mxu0 %v1384
          %v1895 = vpop.f32.mrf.mxu0
          %v1896 = vadd.f32 %v1751, %v1895
          %v1897 = vpop.f32.mrf.mxu0
          %1898 = vmatprep.mubr.f32.mxu0 0.0
          %1899 = vmatmul.mubr.f32.gmra.mxu0 %v1385
          %v1900 = vpop.f32.mrf.mxu0
          %v1901 = vadd.f32 %v1756, %v1900
          %v1902 = vpop.f32.mrf.mxu0
          %1903 = vmatprep.mubr.f32.mxu0 0.0
          %1904 = vmatmul.mubr.f32.gmra.mxu0 %v1386
          %v1905 = vpop.f32.mrf.mxu0
          %v1906 = vadd.f32 %v1761, %v1905
          %v1907 = vpop.f32.mrf.mxu0
          %1908 = vmatprep.mubr.f32.mxu0 0.0
          %1909 = vmatmul.mubr.f32.gmra.mxu0 %v1387
          %v1910 = vpop.f32.mrf.mxu0
          %v1911 = vadd.f32 %v1766, %v1910
          %v1912 = vpop.f32.mrf.mxu0
          %1913 = vmatprep.mubr.f32.mxu0 0.0
          %1914 = vmatmul.mubr.f32.gmra.mxu0 %v1388
          %v1915 = vpop.f32.mrf.mxu0
          %v1916 = vadd.f32 %v1771, %v1915
          %v1917 = vpop.f32.mrf.mxu0
          %1918 = vdwg.mxu0
          %vm1919 = vcmp.ge.f32.partialorder %v1841, 0.0
          %vm1920 = vcmp.ge.f32.partialorder %v1846, 0.0
          %vm1921 = vcmp.ge.f32.partialorder %v1851, 0.0
          %vm1922 = vcmp.ge.f32.partialorder %v1856, 0.0
          %vm1923 = vcmp.ge.f32.partialorder %v1861, 0.0
          %vm1924 = vcmp.ge.f32.partialorder %v1866, 0.0
          %vm1925 = vcmp.ge.f32.partialorder %v1871, 0.0
          %vm1926 = vcmp.ge.f32.partialorder %v1876, 0.0
          %vm1927 = vcmp.ge.f32.partialorder %v1881, 0.0
          %vm1928 = vcmp.ge.f32.partialorder %v1886, 0.0
          %vm1929 = vcmp.ge.f32.partialorder %v1891, 0.0
          %vm1930 = vcmp.ge.f32.partialorder %v1896, 0.0
          %vm1931 = vcmp.ge.f32.partialorder %v1901, 0.0
          %vm1932 = vcmp.ge.f32.partialorder %v1906, 0.0
          %vm1933 = vcmp.ge.f32.partialorder %v1911, 0.0
          %vm1934 = vcmp.ge.f32.partialorder %v1916, 0.0
          %v1935 = vmul.f32 %v1841, 0.22916667
          %v1936 = vmul.f32 %v1846, 0.22916667
          %v1937 = vmul.f32 %v1851, 0.22916667
          %v1938 = vmul.f32 %v1856, 0.22916667
          %v1939 = vmul.f32 %v1861, 0.22916667
          %v1940 = vmul.f32 %v1866, 0.22916667
          %v1941 = vmul.f32 %v1871, 0.22916667
          %v1942 = vmul.f32 %v1876, 0.22916667
          %v1943 = vmul.f32 %v1881, 0.22916667
          %v1944 = vmul.f32 %v1886, 0.22916667
          %v1945 = vmul.f32 %v1891, 0.22916667
          %v1946 = vmul.f32 %v1896, 0.22916667
          %v1947 = vmul.f32 %v1901, 0.22916667
          %v1948 = vmul.f32 %v1906, 0.22916667
          %v1949 = vmul.f32 %v1911, 0.22916667
          %v1950 = vmul.f32 %v1916, 0.22916667
          %v1951 = vsel %vm1919, %v1841, %v1935
          %v1952 = vsel %vm1920, %v1846, %v1936
          %v1953 = vsel %vm1921, %v1851, %v1937
          %v1954 = vsel %vm1922, %v1856, %v1938
          %v1955 = vsel %vm1923, %v1861, %v1939
          %v1956 = vsel %vm1924, %v1866, %v1940
          %v1957 = vsel %vm1925, %v1871, %v1941
          %v1958 = vsel %vm1926, %v1876, %v1942
          %v1959 = vsel %vm1927, %v1881, %v1943
          %v1960 = vsel %vm1928, %v1886, %v1944
          %v1961 = vsel %vm1929, %v1891, %v1945
          %v1962 = vsel %vm1930, %v1896, %v1946
          %v1963 = vsel %vm1931, %v1901, %v1947
          %v1964 = vsel %vm1932, %v1906, %v1948
          %v1965 = vsel %vm1933, %v1911, %v1949
          %v1966 = vsel %vm1934, %v1916, %v1950
          %1967 = vst [vmem:[%s324] sm:$0xff] %v1951
          %1968 = vst [vmem:[%s324 + $0x8] sm:$0xff] %v1952
          %1969 = vst [vmem:[%s324 + $0x10] sm:$0xff] %v1953
          %1970 = vst [vmem:[%s324 + $0x18] sm:$0xff] %v1954
          %1971 = vst [vmem:[%s324 + $0x20] sm:$0xff] %v1955
          %1972 = vst [vmem:[%s324 + $0x28] sm:$0xff] %v1956
          %1973 = vst [vmem:[%s324 + $0x30] sm:$0xff] %v1957
          %1974 = vst [vmem:[%s324 + $0x38] sm:$0xff] %v1958
          %1975 = vst [vmem:[%s324 + $0x40] sm:$0xff] %v1959
          %1976 = vst [vmem:[%s324 + $0x48] sm:$0xff] %v1960
          %1977 = vst [vmem:[%s324 + $0x50] sm:$0xff] %v1961
          %1978 = vst [vmem:[%s324 + $0x58] sm:$0xff] %v1962
          %1979 = vst [vmem:[%s324 + $0x60] sm:$0xff] %v1963
          %1980 = vst [vmem:[%s324 + $0x68] sm:$0xff] %v1964
          %1981 = vst [vmem:[%s324 + $0x70] sm:$0xff] %v1965
          %1982 = vst [vmem:[%s324 + $0x78] sm:$0xff] %v1966
        $region68: #{tpu_custom_call.1} parent=39 // pred_fallthru
          _
        %s1983 = sand.u32 %s162, 1
        %s1984 = scalar_lea.sflag [#allocation6], %s1983
        %s1985 = sand.u32 %s162, 1
        %s1986 = smul.addr %s1985, 128
        %s1987 = scalar_lea.vmem [#allocation13], %s1986
        // Predicated region
        $region69: #{tpu_custom_call.1} parent=39 // pred_check
          %p1988 = pneg %p172
        $region70: #{tpu_custom_call.1} parent=39 // pred_check_branch
          %1990 = sbr.rel (%p1988) target = $region72
        $region71: #{tpu_custom_call.1} parent=39 // pred_region
          %s1991 = smul.u32 16, %s26
          %s1993 = ssub.s32 2048, 2048
          %1994 = vsyncadd %s1984, %s1993
          %s1995 = smul.addr %s1991, 128
          %s1996 = scalar_lea.hbm %s5, %s1995
          %s1997 = sshll.u32 %s1987, 4
          %s1998 = int_to_ptr.vmem [resolvable:$true] %s1997
          %2003 = dma.vmem_to_hbm [thread:$0]  %s1998, 2048, %s1996, %s1984, 128, 128, 8
        $region72: #{tpu_custom_call.1} parent=39 // pred_fallthru
          _
      $region40: #{tpu_custom_call.1} parent=5 // pred_fallthru
        _
      %p2004 = scmp.le.s32.totalorder 2, %s17
      // Predicated region
      $region73: #{tpu_custom_call.1} parent=5 // pred_check
        %p2005 = pneg %p2004
      $region74: #{tpu_custom_call.1} parent=5 // pred_check_branch
        %2007 = sbr.rel (%p2005) target = $region76
      $region75: #{tpu_custom_call.1} parent=5 // pred_region
        %s2008 = ssub.s32 %s17, 2
        // Predicated region
        $region77: #{tpu_custom_call.1} parent=75 // pred_check
          %p2009 = pneg %p178
        $region78: #{tpu_custom_call.1} parent=75 // pred_check_branch
          %2011 = sbr.rel (%p2009) target = $region80
        $region79: #{tpu_custom_call.1} parent=75 // pred_region
          %s2012 = sand.u32 %s163, 1
          %s2013 = scalar_lea.sflag [#allocation6], %s2012
          %s2014 = sand.u32 %s163, 1
          %s2015 = smul.addr %s2014, 128
          %s2016 = scalar_lea.vmem [#allocation13], %s2015
          %2017 = dma.done %s2013, 2048
        $region80: #{tpu_custom_call.1} parent=75 // pred_fallthru
          _
      $region76: #{tpu_custom_call.1} parent=5 // pred_fallthru
        _
    $region6: #{tpu_custom_call.1} parent=1 // loop_footer
      %s21 = sadd.s32 1, %s17
    $region7: #{tpu_custom_call.1} parent=1 // loop_footer_branch
      %16 = sbr.rel target = $region3
    $region8: #{tpu_custom_call.1} parent=1 // loop_exit
      _
    %2018 = vsyncpa [#allocation5], 1
    %s2019 = scalar_lea.sflag [#allocation5], 1
    %2020 = vsyncpa %s2019, 1
    %2021 = vsyncpa [#allocation8], 1
    %2022 = vsyncpa [#allocation12], 1
    %2023 = vsyncpa [#allocation6], 1
    %s2024 = scalar_lea.sflag [#allocation6], 1
    %2025 = vsyncpa %s2024, 1

</llo_original>
